<compile_context>
chip_gen: v7x
topology: tpu7x:2x2x1
jax: 0.10.0
libtpu: 0.0.40
codegen_flags: <defaults>
</compile_context>

<pallas_src>
import functools

import jax
import jax.numpy as jnp
from jax.experimental import pallas as pl
from jax.experimental.pallas import tpu as pltpu


def _resnet_block_kernel(x_ref, w1_ref, g1_ref, be1_ref, w2_ref, g2_ref, be2_ref,
                         o_ref, pad_ref, xcol_ref, *, N, C, H, W, K, eps):
    """Whole block fused in one kernel (toy size -> everything resident in VMEM).

    x_ref:    (N*C, H*W)              f32, rows ordered (n, c)  [free reshape of NCHW]
    w*_ref:   (C, KKC_pad)            f32, columns ordered (kh, kw, ci), zero-padded
    g*/be*:   (C, 1)                  f32
    o_ref:    (N*C, H*W)              f32, rows ordered (n, c)
    pad_ref:  (N*C, off0 + HW + pad)  f32 scratch, flat zero-padded planes
    xcol_ref: (KKC_pad, N*H*W)        f32 scratch, im2col buffer
    """
    HW = H * W
    M = N * HW                           # columns of the channels-major activation
    P = (K - 1) // 2
    pad_amt = P * (W + 1)                # flat zeros needed before/after each plane
    off0 = ((pad_amt + 127) // 128) * 128  # lane-aligned interior offset (>= pad_amt)

    # Column masks fixing the row-wrap artifact of the flat-shift trick: a tap with
    # horizontal offset dw reads the neighbouring row wherever w + dw leaves [0, W).
    col_w = jax.lax.broadcasted_iota(jnp.int32, (C, M), 1) % W
    masks = {dw: (col_w + dw >= 0) & (col_w + dw < W)
             for dw in range(-P, P + 1) if dw != 0}

    # Identity, re-laid out channels-major: x_cm[c, n*HW + p] = x[n, c, p].
    x_cm = jnp.concatenate([x_ref[n * C:(n + 1) * C, :] for n in range(N)], axis=1)

    def stage(act_cm):
        # Write a (C, N*HW) channels-major activation into the interior of the flat
        # padded buffer (rows ordered (n, c)); the zero border columns are untouched.
        for n in range(N):
            pad_ref[n * C:(n + 1) * C, off0:off0 + HW] = act_cm[:, n * HW:(n + 1) * HW]

    def conv(w_ref):
        # im2col: gather the K*K shifted taps into xcol_ref, then one MXU matmul.
        padded = pad_ref[...]                                 # (N*C, off0 + HW + pad)
        for kh in range(K):
            for kw in range(K):
                dh, dw = kh - P, kw - P
                s = off0 + dh * W + dw
                tap = padded[:, s:s + HW]                     # (N*C, HW)
                xt = jnp.concatenate(
                    [tap[n * C:(n + 1) * C, :] for n in range(N)], axis=1)  # (C, M)
                if dw != 0:
                    xt = jnp.where(masks[dw], xt, 0.0)
                t = kh * K + kw
                xcol_ref[t * C:(t + 1) * C, :] = xt
        # (Cout, KKC_pad) @ (KKC_pad, N*H*W) -> (Cout, N*H*W) on the MXU.
        return jnp.dot(w_ref[...], xcol_ref[...], preferred_element_type=jnp.float32)

    def batchnorm(y, g_ref, be_ref):
        # Training-mode BN (per-batch stats, biased variance), fused per-channel FMA.
        mean = jnp.mean(y, axis=1, keepdims=True)                        # (C, 1)
        var = jnp.mean(jnp.square(y - mean), axis=1, keepdims=True)      # (C, 1)
        scale = g_ref[...] * jax.lax.rsqrt(var + eps)                    # (C, 1)
        shift = be_ref[...] - mean * scale                               # (C, 1)
        return y * scale + shift

    # Zero scratch once: border of pad_ref and the zero-padded tail rows of xcol_ref
    # (those rows are never written; the matching weight columns are zero too).
    pad_ref[...] = jnp.zeros(pad_ref.shape, jnp.float32)
    xcol_ref[...] = jnp.zeros(xcol_ref.shape, jnp.float32)

    # conv1 -> bn1 -> relu   (conv bias omitted: cancelled exactly by the BN mean)
    stage(x_cm)
    out = jnp.maximum(batchnorm(conv(w1_ref), g1_ref, be1_ref), 0.0)

    # conv2 -> bn2 -> +identity -> relu
    stage(out)
    out = batchnorm(conv(w2_ref), g2_ref, be2_ref)
    out = jnp.maximum(out + x_cm, 0.0)

    # Store in (N*C, HW) layout (free reshape back to NCHW in the wrapper).
    for n in range(N):
        o_ref[n * C:(n + 1) * C, :] = out[:, n * HW:(n + 1) * HW]

    # TODO(synk): BatchNorm running_mean/running_var buffer updates (a training-mode
    # side effect, not part of the returned tensor) are not reproduced.


def resnet_block_pallas(x_nchw, params, kernel_size):
    N, C, H, W = x_nchw.shape
    K = kernel_size
    assert K % 2 == 1  # TODO(synk): even kernel_size needs asymmetric 'SAME' padding.
    P = (K - 1) // 2
    HW = H * W
    pad_amt = P * (W + 1)
    off0 = ((pad_amt + 127) // 128) * 128
    KKC = K * K * C
    KKC_pad = ((KKC + 7) // 8) * 8

    # Free reshape (no transpose): NCHW -> (N*C, H*W), lane-dense minor dim.
    x2 = x_nchw.reshape(N * C, HW).astype(jnp.float32)

    # Weights: HWIO (K,K,Cin,Cout) -> (Cout, K*K*Cin), columns ordered (kh, kw, ci),
    # zero-padded along the contraction dim to a sublane multiple.
    def prep_w(w):
        wf = w.reshape(KKC, C).T.astype(jnp.float32)          # (Cout, K*K*Cin)
        return jnp.pad(wf, ((0, 0), (0, KKC_pad - KKC)))

    w1f, w2f = prep_w(params["w1"]), prep_w(params["w2"])
    g1 = params["g1"].reshape(C, 1).astype(jnp.float32)
    be1 = params["be1"].reshape(C, 1).astype(jnp.float32)
    g2 = params["g2"].reshape(C, 1).astype(jnp.float32)
    be2 = params["be2"].reshape(C, 1).astype(jnp.float32)
    # Conv biases b1/b2 are NOT passed: training-mode BN cancels them exactly.

    kernel = functools.partial(_resnet_block_kernel,
                               N=N, C=C, H=H, W=W, K=K, eps=1e-5)
    out2 = pl.pallas_call(
        kernel,
        out_shape=jax.ShapeDtypeStruct((N * C, HW), jnp.float32),
        in_specs=[pl.BlockSpec(memory_space=pltpu.MemorySpace.VMEM)] * 7,
        out_specs=pl.BlockSpec(memory_space=pltpu.MemorySpace.VMEM),
        scratch_shapes=[
            pltpu.VMEM((N * C, off0 + HW + pad_amt), jnp.float32),   # flat padded planes
            pltpu.VMEM((KKC_pad, N * HW), jnp.float32),              # im2col buffer
        ],
        # TODO(synk): add a grid over N/H (with a two-pass / cross-core BN reduction)
        # plus BlockSpec tiling before scaling beyond toy sizes (v7x: 2 cores, 64 MiB).
    )(x2, w1f, g1, be1, w2f, g2, be2)

    return out2.reshape(N, C, H, W)   # free reshape, still NCHW


def _reference(x_nchw, params, kernel_size):
    """Pure-JAX reference (same semantics as the PyTorch forward in train mode)."""
    x = jnp.transpose(x_nchw, (0, 2, 3, 1)).astype(jnp.float32)

    def conv(y, w, b):
        out = jax.lax.conv_general_dilated(
            y, w, window_strides=(1, 1), padding="SAME",
            dimension_numbers=("NHWC", "HWIO", "NHWC"))
        return out + b

    def bn(y, g, be, eps=1e-5):
        mean = jnp.mean(y, axis=(0, 1, 2), keepdims=True)
        var = jnp.mean((y - mean) ** 2, axis=(0, 1, 2), keepdims=True)
        return (y - mean) * jax.lax.rsqrt(var + eps) * g + be

    out = jnp.maximum(bn(conv(x, params["w1"], params["b1"]),
                         params["g1"], params["be1"]), 0.0)
    out = bn(conv(out, params["w2"], params["b2"]), params["g2"], params["be2"])
    out = jnp.maximum(out + x, 0.0)
    return jnp.transpose(out, (0, 3, 1, 2))


def init_params(key, dim, kernel_size):
    """Deterministic init mimicking PyTorch defaults (uniform conv, gamma=1, beta=0)."""
    K, C = kernel_size, dim
    bound = 1.0 / jnp.sqrt(jnp.float32(C * K * K))
    k1, k2, k3, k4 = jax.random.split(key, 4)
    return {
        "w1": jax.random.uniform(k1, (K, K, C, C), jnp.float32, -bound, bound),
        "b1": jax.random.uniform(k2, (1, 1, 1, C), jnp.float32, -bound, bound),
        "g1": jnp.ones((1, 1, 1, C), jnp.float32),
        "be1": jnp.zeros((1, 1, 1, C), jnp.float32),
        "w2": jax.random.uniform(k3, (K, K, C, C), jnp.float32, -bound, bound),
        "b2": jax.random.uniform(k4, (1, 1, 1, C), jnp.float32, -bound, bound),
        "g2": jnp.ones((1, 1, 1, C), jnp.float32),
        "be2": jnp.zeros((1, 1, 1, C), jnp.float32),
    }


if __name__ == "__main__":
    # ResNetBlock(dim=4, kernel_size=3, expand_ratio=1, stride=1); expand_ratio unused.
    dim, kernel_size = 4, 3
    key = jax.random.PRNGKey(0)
    kx, kp = jax.random.split(key)

    x = jax.random.normal(kx, (2, dim, 16, 16), jnp.float32)   # NCHW like PyTorch
    params = init_params(kp, dim, kernel_size)

    out = resnet_block_pallas(x, params, kernel_size)
    out = jax.block_until_ready(out)

    ref = _reference(x, params, kernel_size)
    assert out.shape == x.shape and out.dtype == jnp.float32
    assert bool(jnp.allclose(out, ref, atol=1e-4, rtol=1e-4))

    print("KERNEL_OK")
</pallas_src>

<mosaic_0001>
module attributes {stable_mosaic.version = 11 : i64} {
  func.func @_resnet_block_kernel(%arg0: memref<8x256xf32, #tpu.memory_space<vmem>>, %arg1: memref<4x40xf32, #tpu.memory_space<vmem>>, %arg2: memref<4x1xf32, #tpu.memory_space<vmem>>, %arg3: memref<4x1xf32, #tpu.memory_space<vmem>>, %arg4: memref<4x40xf32, #tpu.memory_space<vmem>>, %arg5: memref<4x1xf32, #tpu.memory_space<vmem>>, %arg6: memref<4x1xf32, #tpu.memory_space<vmem>>, %arg7: memref<8x256xf32, #tpu.memory_space<vmem>>, %arg8: memref<8x401xf32, #tpu.memory_space<vmem>>, %arg9: memref<40x512xf32, #tpu.memory_space<vmem>>) attributes {dimension_semantics = [], scalar_prefetch = 0 : i64, scratch_operands = 2 : i64, tpu.core_type = #tpu.core_type<tc>} {
    %0 = tpu.iota {dimensions = array<i32: 1>} : vector<4x512xi32>
    %c16_i32 = arith.constant 16 : i32
    %c0_i32 = arith.constant 0 : i32
    %1 = arith.cmpi eq, %c16_i32, %c0_i32 : i32
    %c1_i32 = arith.constant 1 : i32
    %2 = arith.select %1, %c1_i32, %c16_i32 : i32
    %3 = vector.broadcast %2 : i32 to vector<4x512xi32>
    %4 = arith.remsi %0, %3 : vector<4x512xi32>
    %c0_i32_0 = arith.constant 0 : i32
    %5 = vector.broadcast %c0_i32_0 : i32 to vector<4x512xi32>
    %6 = arith.cmpi ne, %4, %5 : vector<4x512xi32>
    %c0_i32_1 = arith.constant 0 : i32
    %7 = vector.broadcast %c0_i32_1 : i32 to vector<4x512xi32>
    %8 = arith.cmpi slt, %4, %7 : vector<4x512xi32>
    %c0_i32_2 = arith.constant 0 : i32
    %9 = arith.cmpi slt, %2, %c0_i32_2 : i32
    %10 = vector.broadcast %9 : i1 to vector<4x512xi1>
    %11 = vector.broadcast %10 : vector<4x512xi1> to vector<4x512xi1>
    %12 = arith.xori %8, %11 : vector<4x512xi1>
    %13 = arith.andi %12, %6 : vector<4x512xi1>
    %14 = vector.broadcast %2 : i32 to vector<4x512xi32>
    %15 = arith.addi %4, %14 : vector<4x512xi32>
    %16 = arith.select %13, %15, %4 : vector<4x512xi1>, vector<4x512xi32>
    %c-1_i32 = arith.constant -1 : i32
    %17 = vector.broadcast %c-1_i32 : i32 to vector<4x512xi32>
    %18 = arith.addi %16, %17 : vector<4x512xi32>
    %c0_i32_3 = arith.constant 0 : i32
    %19 = vector.broadcast %c0_i32_3 : i32 to vector<4x512xi32>
    %20 = arith.cmpi sge, %18, %19 : vector<4x512xi32>
    %c-1_i32_4 = arith.constant -1 : i32
    %21 = vector.broadcast %c-1_i32_4 : i32 to vector<4x512xi32>
    %22 = arith.addi %16, %21 : vector<4x512xi32>
    %c16_i32_5 = arith.constant 16 : i32
    %23 = vector.broadcast %c16_i32_5 : i32 to vector<4x512xi32>
    %24 = arith.cmpi slt, %22, %23 : vector<4x512xi32>
    %25 = arith.andi %20, %24 : vector<4x512xi1>
    %c1_i32_6 = arith.constant 1 : i32
    %26 = vector.broadcast %c1_i32_6 : i32 to vector<4x512xi32>
    %27 = arith.addi %16, %26 : vector<4x512xi32>
    %c0_i32_7 = arith.constant 0 : i32
    %28 = vector.broadcast %c0_i32_7 : i32 to vector<4x512xi32>
    %29 = arith.cmpi sge, %27, %28 : vector<4x512xi32>
    %c1_i32_8 = arith.constant 1 : i32
    %30 = vector.broadcast %c1_i32_8 : i32 to vector<4x512xi32>
    %31 = arith.addi %16, %30 : vector<4x512xi32>
    %c16_i32_9 = arith.constant 16 : i32
    %32 = vector.broadcast %c16_i32_9 : i32 to vector<4x512xi32>
    %33 = arith.cmpi slt, %31, %32 : vector<4x512xi32>
    %34 = arith.andi %29, %33 : vector<4x512xi1>
    %c0 = arith.constant 0 : index
    %c0_10 = arith.constant 0 : index
    %35 = vector.load %arg0[%c0, %c0_10] : memref<8x256xf32, #tpu.memory_space<vmem>>, vector<4x256xf32>
    %c4 = arith.constant 4 : index
    %c0_11 = arith.constant 0 : index
    %36 = vector.load %arg0[%c4, %c0_11] : memref<8x256xf32, #tpu.memory_space<vmem>>, vector<4x256xf32>
    %37 = tpu.concatenate %35, %36 in 1 : vector<4x256xf32>, vector<4x256xf32> -> vector<4x512xf32>
    %cst = arith.constant 0.000000e+00 : f32
    %38 = vector.broadcast %cst : f32 to vector<8x401xf32>
    %c0_12 = arith.constant 0 : index
    %c0_13 = arith.constant 0 : index
    %39 = vector.load %arg8[%c0_12, %c0_13] : memref<8x401xf32, #tpu.memory_space<vmem>>, vector<8x401xf32>
    tpu.vector_store %arg8[%c0_12, %c0_13], %38 {strides = array<i32>} : memref<8x401xf32, #tpu.memory_space<vmem>>, vector<8x401xf32>,
    %cst_14 = arith.constant 0.000000e+00 : f32
    %40 = vector.broadcast %cst_14 : f32 to vector<40x512xf32>
    %c0_15 = arith.constant 0 : index
    %c0_16 = arith.constant 0 : index
    %41 = vector.load %arg9[%c0_15, %c0_16] : memref<40x512xf32, #tpu.memory_space<vmem>>, vector<40x512xf32>
    tpu.vector_store %arg9[%c0_15, %c0_16], %40 {strides = array<i32>} : memref<40x512xf32, #tpu.memory_space<vmem>>, vector<40x512xf32>,
    %42 = vector.extract_strided_slice %37 {offsets = [0, 0], sizes = [4, 256], strides = [1, 1]} : vector<4x512xf32> to vector<4x256xf32>
    %c0_17 = arith.constant 0 : index
    %c128 = arith.constant 128 : index
    %43 = vector.load %arg8[%c0_17, %c128] : memref<8x401xf32, #tpu.memory_space<vmem>>, vector<4x256xf32>
    tpu.vector_store %arg8[%c0_17, %c128], %42 {strides = array<i32>} : memref<8x401xf32, #tpu.memory_space<vmem>>, vector<4x256xf32>,
    %44 = vector.extract_strided_slice %37 {offsets = [0, 256], sizes = [4, 256], strides = [1, 1]} : vector<4x512xf32> to vector<4x256xf32>
    %c4_18 = arith.constant 4 : index
    %c128_19 = arith.constant 128 : index
    %45 = vector.load %arg8[%c4_18, %c128_19] : memref<8x401xf32, #tpu.memory_space<vmem>>, vector<4x256xf32>
    tpu.vector_store %arg8[%c4_18, %c128_19], %44 {strides = array<i32>} : memref<8x401xf32, #tpu.memory_space<vmem>>, vector<4x256xf32>,
    %c0_20 = arith.constant 0 : index
    %c0_21 = arith.constant 0 : index
    %46 = vector.load %arg8[%c0_20, %c0_21] : memref<8x401xf32, #tpu.memory_space<vmem>>, vector<8x401xf32>
    %47 = vector.extract_strided_slice %46 {offsets = [0, 111], sizes = [8, 256], strides = [1, 1]} : vector<8x401xf32> to vector<8x256xf32>
    %48 = vector.extract_strided_slice %47 {offsets = [0, 0], sizes = [4, 256], strides = [1, 1]} : vector<8x256xf32> to vector<4x256xf32>
    %49 = vector.extract_strided_slice %47 {offsets = [4, 0], sizes = [4, 256], strides = [1, 1]} : vector<8x256xf32> to vector<4x256xf32>
    %50 = tpu.concatenate %48, %49 in 1 : vector<4x256xf32>, vector<4x256xf32> -> vector<4x512xf32>
    %cst_22 = arith.constant 0.000000e+00 : f32
    %51 = vector.broadcast %cst_22 : f32 to vector<4x512xf32>
    %52 = arith.select %25, %50, %51 : vector<4x512xi1>, vector<4x512xf32>
    %c0_23 = arith.constant 0 : index
    %c0_24 = arith.constant 0 : index
    %53 = vector.load %arg9[%c0_23, %c0_24] : memref<40x512xf32, #tpu.memory_space<vmem>>, vector<4x512xf32>
    tpu.vector_store %arg9[%c0_23, %c0_24], %52 {strides = array<i32>} : memref<40x512xf32, #tpu.memory_space<vmem>>, vector<4x512xf32>,
    %54 = vector.extract_strided_slice %46 {offsets = [0, 112], sizes = [8, 256], strides = [1, 1]} : vector<8x401xf32> to vector<8x256xf32>
    %55 = vector.extract_strided_slice %54 {offsets = [0, 0], sizes = [4, 256], strides = [1, 1]} : vector<8x256xf32> to vector<4x256xf32>
    %56 = vector.extract_strided_slice %54 {offsets = [4, 0], sizes = [4, 256], strides = [1, 1]} : vector<8x256xf32> to vector<4x256xf32>
    %57 = tpu.concatenate %55, %56 in 1 : vector<4x256xf32>, vector<4x256xf32> -> vector<4x512xf32>
    %c4_25 = arith.constant 4 : index
    %c0_26 = arith.constant 0 : index
    %58 = vector.load %arg9[%c4_25, %c0_26] : memref<40x512xf32, #tpu.memory_space<vmem>>, vector<4x512xf32>
    tpu.vector_store %arg9[%c4_25, %c0_26], %57 {strides = array<i32>} : memref<40x512xf32, #tpu.memory_space<vmem>>, vector<4x512xf32>,
    %59 = vector.extract_strided_slice %46 {offsets = [0, 113], sizes = [8, 256], strides = [1, 1]} : vector<8x401xf32> to vector<8x256xf32>
    %60 = vector.extract_strided_slice %59 {offsets = [0, 0], sizes = [4, 256], strides = [1, 1]} : vector<8x256xf32> to vector<4x256xf32>
    %61 = vector.extract_strided_slice %59 {offsets = [4, 0], sizes = [4, 256], strides = [1, 1]} : vector<8x256xf32> to vector<4x256xf32>
    %62 = tpu.concatenate %60, %61 in 1 : vector<4x256xf32>, vector<4x256xf32> -> vector<4x512xf32>
    %cst_27 = arith.constant 0.000000e+00 : f32
    %63 = vector.broadcast %cst_27 : f32 to vector<4x512xf32>
    %64 = arith.select %34, %62, %63 : vector<4x512xi1>, vector<4x512xf32>
    %c8 = arith.constant 8 : index
    %c0_28 = arith.constant 0 : index
    %65 = vector.load %arg9[%c8, %c0_28] : memref<40x512xf32, #tpu.memory_space<vmem>>, vector<4x512xf32>
    tpu.vector_store %arg9[%c8, %c0_28], %64 {strides = array<i32>} : memref<40x512xf32, #tpu.memory_space<vmem>>, vector<4x512xf32>,
    %66 = vector.extract_strided_slice %46 {offsets = [0, 127], sizes = [8, 256], strides = [1, 1]} : vector<8x401xf32> to vector<8x256xf32>
    %67 = vector.extract_strided_slice %66 {offsets = [0, 0], sizes = [4, 256], strides = [1, 1]} : vector<8x256xf32> to vector<4x256xf32>
    %68 = vector.extract_strided_slice %66 {offsets = [4, 0], sizes = [4, 256], strides = [1, 1]} : vector<8x256xf32> to vector<4x256xf32>
    %69 = tpu.concatenate %67, %68 in 1 : vector<4x256xf32>, vector<4x256xf32> -> vector<4x512xf32>
    %cst_29 = arith.constant 0.000000e+00 : f32
    %70 = vector.broadcast %cst_29 : f32 to vector<4x512xf32>
    %71 = arith.select %25, %69, %70 : vector<4x512xi1>, vector<4x512xf32>
    %c12 = arith.constant 12 : index
    %c0_30 = arith.constant 0 : index
    %72 = vector.load %arg9[%c12, %c0_30] : memref<40x512xf32, #tpu.memory_space<vmem>>, vector<4x512xf32>
    tpu.vector_store %arg9[%c12, %c0_30], %71 {strides = array<i32>} : memref<40x512xf32, #tpu.memory_space<vmem>>, vector<4x512xf32>,
    %73 = vector.extract_strided_slice %46 {offsets = [0, 128], sizes = [8, 256], strides = [1, 1]} : vector<8x401xf32> to vector<8x256xf32>
    %74 = vector.extract_strided_slice %73 {offsets = [0, 0], sizes = [4, 256], strides = [1, 1]} : vector<8x256xf32> to vector<4x256xf32>
    %75 = vector.extract_strided_slice %73 {offsets = [4, 0], sizes = [4, 256], strides = [1, 1]} : vector<8x256xf32> to vector<4x256xf32>
    %76 = tpu.concatenate %74, %75 in 1 : vector<4x256xf32>, vector<4x256xf32> -> vector<4x512xf32>
    %c16 = arith.constant 16 : index
    %c0_31 = arith.constant 0 : index
    %77 = vector.load %arg9[%c16, %c0_31] : memref<40x512xf32, #tpu.memory_space<vmem>>, vector<4x512xf32>
    tpu.vector_store %arg9[%c16, %c0_31], %76 {strides = array<i32>} : memref<40x512xf32, #tpu.memory_space<vmem>>, vector<4x512xf32>,
    %78 = vector.extract_strided_slice %46 {offsets = [0, 129], sizes = [8, 256], strides = [1, 1]} : vector<8x401xf32> to vector<8x256xf32>
    %79 = vector.extract_strided_slice %78 {offsets = [0, 0], sizes = [4, 256], strides = [1, 1]} : vector<8x256xf32> to vector<4x256xf32>
    %80 = vector.extract_strided_slice %78 {offsets = [4, 0], sizes = [4, 256], strides = [1, 1]} : vector<8x256xf32> to vector<4x256xf32>
    %81 = tpu.concatenate %79, %80 in 1 : vector<4x256xf32>, vector<4x256xf32> -> vector<4x512xf32>
    %cst_32 = arith.constant 0.000000e+00 : f32
    %82 = vector.broadcast %cst_32 : f32 to vector<4x512xf32>
    %83 = arith.select %34, %81, %82 : vector<4x512xi1>, vector<4x512xf32>
    %c20 = arith.constant 20 : index
    %c0_33 = arith.constant 0 : index
    %84 = vector.load %arg9[%c20, %c0_33] : memref<40x512xf32, #tpu.memory_space<vmem>>, vector<4x512xf32>
    tpu.vector_store %arg9[%c20, %c0_33], %83 {strides = array<i32>} : memref<40x512xf32, #tpu.memory_space<vmem>>, vector<4x512xf32>,
    %85 = vector.extract_strided_slice %46 {offsets = [0, 143], sizes = [8, 256], strides = [1, 1]} : vector<8x401xf32> to vector<8x256xf32>
    %86 = vector.extract_strided_slice %85 {offsets = [0, 0], sizes = [4, 256], strides = [1, 1]} : vector<8x256xf32> to vector<4x256xf32>
    %87 = vector.extract_strided_slice %85 {offsets = [4, 0], sizes = [4, 256], strides = [1, 1]} : vector<8x256xf32> to vector<4x256xf32>
    %88 = tpu.concatenate %86, %87 in 1 : vector<4x256xf32>, vector<4x256xf32> -> vector<4x512xf32>
    %cst_34 = arith.constant 0.000000e+00 : f32
    %89 = vector.broadcast %cst_34 : f32 to vector<4x512xf32>
    %90 = arith.select %25, %88, %89 : vector<4x512xi1>, vector<4x512xf32>
    %c24 = arith.constant 24 : index
    %c0_35 = arith.constant 0 : index
    %91 = vector.load %arg9[%c24, %c0_35] : memref<40x512xf32, #tpu.memory_space<vmem>>, vector<4x512xf32>
    tpu.vector_store %arg9[%c24, %c0_35], %90 {strides = array<i32>} : memref<40x512xf32, #tpu.memory_space<vmem>>, vector<4x512xf32>,
    %92 = vector.extract_strided_slice %46 {offsets = [0, 144], sizes = [8, 256], strides = [1, 1]} : vector<8x401xf32> to vector<8x256xf32>
    %93 = vector.extract_strided_slice %92 {offsets = [0, 0], sizes = [4, 256], strides = [1, 1]} : vector<8x256xf32> to vector<4x256xf32>
    %94 = vector.extract_strided_slice %92 {offsets = [4, 0], sizes = [4, 256], strides = [1, 1]} : vector<8x256xf32> to vector<4x256xf32>
    %95 = tpu.concatenate %93, %94 in 1 : vector<4x256xf32>, vector<4x256xf32> -> vector<4x512xf32>
    %c28 = arith.constant 28 : index
    %c0_36 = arith.constant 0 : index
    %96 = vector.load %arg9[%c28, %c0_36] : memref<40x512xf32, #tpu.memory_space<vmem>>, vector<4x512xf32>
    tpu.vector_store %arg9[%c28, %c0_36], %95 {strides = array<i32>} : memref<40x512xf32, #tpu.memory_space<vmem>>, vector<4x512xf32>,
    %97 = vector.extract_strided_slice %46 {offsets = [0, 145], sizes = [8, 256], strides = [1, 1]} : vector<8x401xf32> to vector<8x256xf32>
    %98 = vector.extract_strided_slice %97 {offsets = [0, 0], sizes = [4, 256], strides = [1, 1]} : vector<8x256xf32> to vector<4x256xf32>
    %99 = vector.extract_strided_slice %97 {offsets = [4, 0], sizes = [4, 256], strides = [1, 1]} : vector<8x256xf32> to vector<4x256xf32>
    %100 = tpu.concatenate %98, %99 in 1 : vector<4x256xf32>, vector<4x256xf32> -> vector<4x512xf32>
    %cst_37 = arith.constant 0.000000e+00 : f32
    %101 = vector.broadcast %cst_37 : f32 to vector<4x512xf32>
    %102 = arith.select %34, %100, %101 : vector<4x512xi1>, vector<4x512xf32>
    %c32 = arith.constant 32 : index
    %c0_38 = arith.constant 0 : index
    %103 = vector.load %arg9[%c32, %c0_38] : memref<40x512xf32, #tpu.memory_space<vmem>>, vector<4x512xf32>
    tpu.vector_store %arg9[%c32, %c0_38], %102 {strides = array<i32>} : memref<40x512xf32, #tpu.memory_space<vmem>>, vector<4x512xf32>,
    %c0_39 = arith.constant 0 : index
    %c0_40 = arith.constant 0 : index
    %104 = vector.load %arg1[%c0_39, %c0_40] : memref<4x40xf32, #tpu.memory_space<vmem>>, vector<4x40xf32>
    %c0_41 = arith.constant 0 : index
    %c0_42 = arith.constant 0 : index
    %105 = vector.load %arg9[%c0_41, %c0_42] : memref<40x512xf32, #tpu.memory_space<vmem>>, vector<40x512xf32>
    %cst_43 = arith.constant dense<0.000000e+00> : vector<4x512xf32>
    %106 = tpu.matmul %104, %105, %cst_43 {dimension_numbers = #tpu.dot_dimension_numbers<[1], [0], [0], [1], [0, 0, 1, 1], [], []>} : vector<4x40xf32>, vector<40x512xf32>, vector<4x512xf32> -> vector<4x512xf32>
    %cst_44 = arith.constant dense<0.000000e+00> : vector<4xf32>
    %107 = vector.multi_reduction <add>, %106, %cst_44 [1] : vector<4x512xf32> to vector<4xf32>
    %108 = vector.shape_cast %107 : vector<4xf32> to vector<4x1xf32>
    %cst_45 = arith.constant 5.120000e+02 : f32
    %109 = vector.broadcast %cst_45 : f32 to vector<4x1xf32>
    %110 = arith.divf %108, %109 : vector<4x1xf32>
    %111 = vector.broadcast %110 : vector<4x1xf32> to vector<4x512xf32>
    %112 = arith.subf %106, %111 : vector<4x512xf32>
    %113 = arith.mulf %112, %112 : vector<4x512xf32>
    %cst_46 = arith.constant dense<0.000000e+00> : vector<4xf32>
    %114 = vector.multi_reduction <add>, %113, %cst_46 [1] : vector<4x512xf32> to vector<4xf32>
    %115 = vector.shape_cast %114 : vector<4xf32> to vector<4x1xf32>
    %cst_47 = arith.constant 5.120000e+02 : f32
    %116 = vector.broadcast %cst_47 : f32 to vector<4x1xf32>
    %117 = arith.divf %115, %116 : vector<4x1xf32>
    %c0_48 = arith.constant 0 : index
    %c0_49 = arith.constant 0 : index
    %118 = vector.load %arg2[%c0_48, %c0_49] : memref<4x1xf32, #tpu.memory_space<vmem>>, vector<4x1xf32>
    %cst_50 = arith.constant 9.99999974E-6 : f32
    %119 = vector.broadcast %cst_50 : f32 to vector<4x1xf32>
    %120 = arith.addf %117, %119 : vector<4x1xf32>
    %121 = math.rsqrt %120 : vector<4x1xf32>
    %122 = arith.mulf %118, %121 : vector<4x1xf32>
    %c0_51 = arith.constant 0 : index
    %c0_52 = arith.constant 0 : index
    %123 = vector.load %arg3[%c0_51, %c0_52] : memref<4x1xf32, #tpu.memory_space<vmem>>, vector<4x1xf32>
    %124 = arith.mulf %110, %122 : vector<4x1xf32>
    %125 = arith.subf %123, %124 : vector<4x1xf32>
    %126 = vector.broadcast %122 : vector<4x1xf32> to vector<4x512xf32>
    %127 = arith.mulf %106, %126 : vector<4x512xf32>
    %128 = vector.broadcast %125 : vector<4x1xf32> to vector<4x512xf32>
    %129 = arith.addf %127, %128 : vector<4x512xf32>
    %cst_53 = arith.constant 0.000000e+00 : f32
    %130 = vector.broadcast %cst_53 : f32 to vector<4x512xf32>
    %131 = arith.maximumf %129, %130 : vector<4x512xf32>
    %132 = vector.extract_strided_slice %131 {offsets = [0, 0], sizes = [4, 256], strides = [1, 1]} : vector<4x512xf32> to vector<4x256xf32>
    %c0_54 = arith.constant 0 : index
    %c128_55 = arith.constant 128 : index
    %133 = vector.load %arg8[%c0_54, %c128_55] : memref<8x401xf32, #tpu.memory_space<vmem>>, vector<4x256xf32>
    tpu.vector_store %arg8[%c0_54, %c128_55], %132 {strides = array<i32>} : memref<8x401xf32, #tpu.memory_space<vmem>>, vector<4x256xf32>,
    %134 = vector.extract_strided_slice %131 {offsets = [0, 256], sizes = [4, 256], strides = [1, 1]} : vector<4x512xf32> to vector<4x256xf32>
    %c4_56 = arith.constant 4 : index
    %c128_57 = arith.constant 128 : index
    %135 = vector.load %arg8[%c4_56, %c128_57] : memref<8x401xf32, #tpu.memory_space<vmem>>, vector<4x256xf32>
    tpu.vector_store %arg8[%c4_56, %c128_57], %134 {strides = array<i32>} : memref<8x401xf32, #tpu.memory_space<vmem>>, vector<4x256xf32>,
    %c0_58 = arith.constant 0 : index
    %c0_59 = arith.constant 0 : index
    %136 = vector.load %arg8[%c0_58, %c0_59] : memref<8x401xf32, #tpu.memory_space<vmem>>, vector<8x401xf32>
    %137 = vector.extract_strided_slice %136 {offsets = [0, 111], sizes = [8, 256], strides = [1, 1]} : vector<8x401xf32> to vector<8x256xf32>
    %138 = vector.extract_strided_slice %137 {offsets = [0, 0], sizes = [4, 256], strides = [1, 1]} : vector<8x256xf32> to vector<4x256xf32>
    %139 = vector.extract_strided_slice %137 {offsets = [4, 0], sizes = [4, 256], strides = [1, 1]} : vector<8x256xf32> to vector<4x256xf32>
    %140 = tpu.concatenate %138, %139 in 1 : vector<4x256xf32>, vector<4x256xf32> -> vector<4x512xf32>
    %cst_60 = arith.constant 0.000000e+00 : f32
    %141 = vector.broadcast %cst_60 : f32 to vector<4x512xf32>
    %142 = arith.select %25, %140, %141 : vector<4x512xi1>, vector<4x512xf32>
    %c0_61 = arith.constant 0 : index
    %c0_62 = arith.constant 0 : index
    %143 = vector.load %arg9[%c0_61, %c0_62] : memref<40x512xf32, #tpu.memory_space<vmem>>, vector<4x512xf32>
    tpu.vector_store %arg9[%c0_61, %c0_62], %142 {strides = array<i32>} : memref<40x512xf32, #tpu.memory_space<vmem>>, vector<4x512xf32>,
    %144 = vector.extract_strided_slice %136 {offsets = [0, 112], sizes = [8, 256], strides = [1, 1]} : vector<8x401xf32> to vector<8x256xf32>
    %145 = vector.extract_strided_slice %144 {offsets = [0, 0], sizes = [4, 256], strides = [1, 1]} : vector<8x256xf32> to vector<4x256xf32>
    %146 = vector.extract_strided_slice %144 {offsets = [4, 0], sizes = [4, 256], strides = [1, 1]} : vector<8x256xf32> to vector<4x256xf32>
    %147 = tpu.concatenate %145, %146 in 1 : vector<4x256xf32>, vector<4x256xf32> -> vector<4x512xf32>
    %c4_63 = arith.constant 4 : index
    %c0_64 = arith.constant 0 : index
    %148 = vector.load %arg9[%c4_63, %c0_64] : memref<40x512xf32, #tpu.memory_space<vmem>>, vector<4x512xf32>
    tpu.vector_store %arg9[%c4_63, %c0_64], %147 {strides = array<i32>} : memref<40x512xf32, #tpu.memory_space<vmem>>, vector<4x512xf32>,
    %149 = vector.extract_strided_slice %136 {offsets = [0, 113], sizes = [8, 256], strides = [1, 1]} : vector<8x401xf32> to vector<8x256xf32>
    %150 = vector.extract_strided_slice %149 {offsets = [0, 0], sizes = [4, 256], strides = [1, 1]} : vector<8x256xf32> to vector<4x256xf32>
    %151 = vector.extract_strided_slice %149 {offsets = [4, 0], sizes = [4, 256], strides = [1, 1]} : vector<8x256xf32> to vector<4x256xf32>
    %152 = tpu.concatenate %150, %151 in 1 : vector<4x256xf32>, vector<4x256xf32> -> vector<4x512xf32>
    %cst_65 = arith.constant 0.000000e+00 : f32
    %153 = vector.broadcast %cst_65 : f32 to vector<4x512xf32>
    %154 = arith.select %34, %152, %153 : vector<4x512xi1>, vector<4x512xf32>
    %c8_66 = arith.constant 8 : index
    %c0_67 = arith.constant 0 : index
    %155 = vector.load %arg9[%c8_66, %c0_67] : memref<40x512xf32, #tpu.memory_space<vmem>>, vector<4x512xf32>
    tpu.vector_store %arg9[%c8_66, %c0_67], %154 {strides = array<i32>} : memref<40x512xf32, #tpu.memory_space<vmem>>, vector<4x512xf32>,
    %156 = vector.extract_strided_slice %136 {offsets = [0, 127], sizes = [8, 256], strides = [1, 1]} : vector<8x401xf32> to vector<8x256xf32>
    %157 = vector.extract_strided_slice %156 {offsets = [0, 0], sizes = [4, 256], strides = [1, 1]} : vector<8x256xf32> to vector<4x256xf32>
    %158 = vector.extract_strided_slice %156 {offsets = [4, 0], sizes = [4, 256], strides = [1, 1]} : vector<8x256xf32> to vector<4x256xf32>
    %159 = tpu.concatenate %157, %158 in 1 : vector<4x256xf32>, vector<4x256xf32> -> vector<4x512xf32>
    %cst_68 = arith.constant 0.000000e+00 : f32
    %160 = vector.broadcast %cst_68 : f32 to vector<4x512xf32>
    %161 = arith.select %25, %159, %160 : vector<4x512xi1>, vector<4x512xf32>
    %c12_69 = arith.constant 12 : index
    %c0_70 = arith.constant 0 : index
    %162 = vector.load %arg9[%c12_69, %c0_70] : memref<40x512xf32, #tpu.memory_space<vmem>>, vector<4x512xf32>
    tpu.vector_store %arg9[%c12_69, %c0_70], %161 {strides = array<i32>} : memref<40x512xf32, #tpu.memory_space<vmem>>, vector<4x512xf32>,
    %163 = vector.extract_strided_slice %136 {offsets = [0, 128], sizes = [8, 256], strides = [1, 1]} : vector<8x401xf32> to vector<8x256xf32>
    %164 = vector.extract_strided_slice %163 {offsets = [0, 0], sizes = [4, 256], strides = [1, 1]} : vector<8x256xf32> to vector<4x256xf32>
    %165 = vector.extract_strided_slice %163 {offsets = [4, 0], sizes = [4, 256], strides = [1, 1]} : vector<8x256xf32> to vector<4x256xf32>
    %166 = tpu.concatenate %164, %165 in 1 : vector<4x256xf32>, vector<4x256xf32> -> vector<4x512xf32>
    %c16_71 = arith.constant 16 : index
    %c0_72 = arith.constant 0 : index
    %167 = vector.load %arg9[%c16_71, %c0_72] : memref<40x512xf32, #tpu.memory_space<vmem>>, vector<4x512xf32>
    tpu.vector_store %arg9[%c16_71, %c0_72], %166 {strides = array<i32>} : memref<40x512xf32, #tpu.memory_space<vmem>>, vector<4x512xf32>,
    %168 = vector.extract_strided_slice %136 {offsets = [0, 129], sizes = [8, 256], strides = [1, 1]} : vector<8x401xf32> to vector<8x256xf32>
    %169 = vector.extract_strided_slice %168 {offsets = [0, 0], sizes = [4, 256], strides = [1, 1]} : vector<8x256xf32> to vector<4x256xf32>
    %170 = vector.extract_strided_slice %168 {offsets = [4, 0], sizes = [4, 256], strides = [1, 1]} : vector<8x256xf32> to vector<4x256xf32>
    %171 = tpu.concatenate %169, %170 in 1 : vector<4x256xf32>, vector<4x256xf32> -> vector<4x512xf32>
    %cst_73 = arith.constant 0.000000e+00 : f32
    %172 = vector.broadcast %cst_73 : f32 to vector<4x512xf32>
    %173 = arith.select %34, %171, %172 : vector<4x512xi1>, vector<4x512xf32>
    %c20_74 = arith.constant 20 : index
    %c0_75 = arith.constant 0 : index
    %174 = vector.load %arg9[%c20_74, %c0_75] : memref<40x512xf32, #tpu.memory_space<vmem>>, vector<4x512xf32>
    tpu.vector_store %arg9[%c20_74, %c0_75], %173 {strides = array<i32>} : memref<40x512xf32, #tpu.memory_space<vmem>>, vector<4x512xf32>,
    %175 = vector.extract_strided_slice %136 {offsets = [0, 143], sizes = [8, 256], strides = [1, 1]} : vector<8x401xf32> to vector<8x256xf32>
    %176 = vector.extract_strided_slice %175 {offsets = [0, 0], sizes = [4, 256], strides = [1, 1]} : vector<8x256xf32> to vector<4x256xf32>
    %177 = vector.extract_strided_slice %175 {offsets = [4, 0], sizes = [4, 256], strides = [1, 1]} : vector<8x256xf32> to vector<4x256xf32>
    %178 = tpu.concatenate %176, %177 in 1 : vector<4x256xf32>, vector<4x256xf32> -> vector<4x512xf32>
    %cst_76 = arith.constant 0.000000e+00 : f32
    %179 = vector.broadcast %cst_76 : f32 to vector<4x512xf32>
    %180 = arith.select %25, %178, %179 : vector<4x512xi1>, vector<4x512xf32>
    %c24_77 = arith.constant 24 : index
    %c0_78 = arith.constant 0 : index
    %181 = vector.load %arg9[%c24_77, %c0_78] : memref<40x512xf32, #tpu.memory_space<vmem>>, vector<4x512xf32>
    tpu.vector_store %arg9[%c24_77, %c0_78], %180 {strides = array<i32>} : memref<40x512xf32, #tpu.memory_space<vmem>>, vector<4x512xf32>,
    %182 = vector.extract_strided_slice %136 {offsets = [0, 144], sizes = [8, 256], strides = [1, 1]} : vector<8x401xf32> to vector<8x256xf32>
    %183 = vector.extract_strided_slice %182 {offsets = [0, 0], sizes = [4, 256], strides = [1, 1]} : vector<8x256xf32> to vector<4x256xf32>
    %184 = vector.extract_strided_slice %182 {offsets = [4, 0], sizes = [4, 256], strides = [1, 1]} : vector<8x256xf32> to vector<4x256xf32>
    %185 = tpu.concatenate %183, %184 in 1 : vector<4x256xf32>, vector<4x256xf32> -> vector<4x512xf32>
    %c28_79 = arith.constant 28 : index
    %c0_80 = arith.constant 0 : index
    %186 = vector.load %arg9[%c28_79, %c0_80] : memref<40x512xf32, #tpu.memory_space<vmem>>, vector<4x512xf32>
    tpu.vector_store %arg9[%c28_79, %c0_80], %185 {strides = array<i32>} : memref<40x512xf32, #tpu.memory_space<vmem>>, vector<4x512xf32>,
    %187 = vector.extract_strided_slice %136 {offsets = [0, 145], sizes = [8, 256], strides = [1, 1]} : vector<8x401xf32> to vector<8x256xf32>
    %188 = vector.extract_strided_slice %187 {offsets = [0, 0], sizes = [4, 256], strides = [1, 1]} : vector<8x256xf32> to vector<4x256xf32>
    %189 = vector.extract_strided_slice %187 {offsets = [4, 0], sizes = [4, 256], strides = [1, 1]} : vector<8x256xf32> to vector<4x256xf32>
    %190 = tpu.concatenate %188, %189 in 1 : vector<4x256xf32>, vector<4x256xf32> -> vector<4x512xf32>
    %cst_81 = arith.constant 0.000000e+00 : f32
    %191 = vector.broadcast %cst_81 : f32 to vector<4x512xf32>
    %192 = arith.select %34, %190, %191 : vector<4x512xi1>, vector<4x512xf32>
    %c32_82 = arith.constant 32 : index
    %c0_83 = arith.constant 0 : index
    %193 = vector.load %arg9[%c32_82, %c0_83] : memref<40x512xf32, #tpu.memory_space<vmem>>, vector<4x512xf32>
    tpu.vector_store %arg9[%c32_82, %c0_83], %192 {strides = array<i32>} : memref<40x512xf32, #tpu.memory_space<vmem>>, vector<4x512xf32>,
    %c0_84 = arith.constant 0 : index
    %c0_85 = arith.constant 0 : index
    %194 = vector.load %arg4[%c0_84, %c0_85] : memref<4x40xf32, #tpu.memory_space<vmem>>, vector<4x40xf32>
    %c0_86 = arith.constant 0 : index
    %c0_87 = arith.constant 0 : index
    %195 = vector.load %arg9[%c0_86, %c0_87] : memref<40x512xf32, #tpu.memory_space<vmem>>, vector<40x512xf32>
    %cst_88 = arith.constant dense<0.000000e+00> : vector<4x512xf32>
    %196 = tpu.matmul %194, %195, %cst_88 {dimension_numbers = #tpu.dot_dimension_numbers<[1], [0], [0], [1], [0, 0, 1, 1], [], []>} : vector<4x40xf32>, vector<40x512xf32>, vector<4x512xf32> -> vector<4x512xf32>
    %cst_89 = arith.constant dense<0.000000e+00> : vector<4xf32>
    %197 = vector.multi_reduction <add>, %196, %cst_89 [1] : vector<4x512xf32> to vector<4xf32>
    %198 = vector.shape_cast %197 : vector<4xf32> to vector<4x1xf32>
    %cst_90 = arith.constant 5.120000e+02 : f32
    %199 = vector.broadcast %cst_90 : f32 to vector<4x1xf32>
    %200 = arith.divf %198, %199 : vector<4x1xf32>
    %201 = vector.broadcast %200 : vector<4x1xf32> to vector<4x512xf32>
    %202 = arith.subf %196, %201 : vector<4x512xf32>
    %203 = arith.mulf %202, %202 : vector<4x512xf32>
    %cst_91 = arith.constant dense<0.000000e+00> : vector<4xf32>
    %204 = vector.multi_reduction <add>, %203, %cst_91 [1] : vector<4x512xf32> to vector<4xf32>
    %205 = vector.shape_cast %204 : vector<4xf32> to vector<4x1xf32>
    %cst_92 = arith.constant 5.120000e+02 : f32
    %206 = vector.broadcast %cst_92 : f32 to vector<4x1xf32>
    %207 = arith.divf %205, %206 : vector<4x1xf32>
    %c0_93 = arith.constant 0 : index
    %c0_94 = arith.constant 0 : index
    %208 = vector.load %arg5[%c0_93, %c0_94] : memref<4x1xf32, #tpu.memory_space<vmem>>, vector<4x1xf32>
    %cst_95 = arith.constant 9.99999974E-6 : f32
    %209 = vector.broadcast %cst_95 : f32 to vector<4x1xf32>
    %210 = arith.addf %207, %209 : vector<4x1xf32>
    %211 = math.rsqrt %210 : vector<4x1xf32>
    %212 = arith.mulf %208, %211 : vector<4x1xf32>
    %c0_96 = arith.constant 0 : index
    %c0_97 = arith.constant 0 : index
    %213 = vector.load %arg6[%c0_96, %c0_97] : memref<4x1xf32, #tpu.memory_space<vmem>>, vector<4x1xf32>
    %214 = arith.mulf %200, %212 : vector<4x1xf32>
    %215 = arith.subf %213, %214 : vector<4x1xf32>
    %216 = vector.broadcast %212 : vector<4x1xf32> to vector<4x512xf32>
    %217 = arith.mulf %196, %216 : vector<4x512xf32>
    %218 = vector.broadcast %215 : vector<4x1xf32> to vector<4x512xf32>
    %219 = arith.addf %217, %218 : vector<4x512xf32>
    %220 = arith.addf %219, %37 : vector<4x512xf32>
    %cst_98 = arith.constant 0.000000e+00 : f32
    %221 = vector.broadcast %cst_98 : f32 to vector<4x512xf32>
    %222 = arith.maximumf %220, %221 : vector<4x512xf32>
    %223 = vector.extract_strided_slice %222 {offsets = [0, 0], sizes = [4, 256], strides = [1, 1]} : vector<4x512xf32> to vector<4x256xf32>
    %c0_99 = arith.constant 0 : index
    %c0_100 = arith.constant 0 : index
    %224 = vector.load %arg7[%c0_99, %c0_100] : memref<8x256xf32, #tpu.memory_space<vmem>>, vector<4x256xf32>
    tpu.vector_store %arg7[%c0_99, %c0_100], %223 {strides = array<i32>} : memref<8x256xf32, #tpu.memory_space<vmem>>, vector<4x256xf32>,
    %225 = vector.extract_strided_slice %222 {offsets = [0, 256], sizes = [4, 256], strides = [1, 1]} : vector<4x512xf32> to vector<4x256xf32>
    %c4_101 = arith.constant 4 : index
    %c0_102 = arith.constant 0 : index
    %226 = vector.load %arg7[%c4_101, %c0_102] : memref<8x256xf32, #tpu.memory_space<vmem>>, vector<4x256xf32>
    tpu.vector_store %arg7[%c4_101, %c0_102], %225 {strides = array<i32>} : memref<8x256xf32, #tpu.memory_space<vmem>>, vector<4x256xf32>,
    return
  }
}

</mosaic_0001>

<llo_original>
// kernel: tpu_custom_call.1
$region0: #{tpu_custom_call.1}
  #allocation0 [shape = 'u32[]', space=smem, size = 0x4, offset = 0x4, fixed_abs, tag = 'smem constant byte address 0x4 - core index']
  #allocation1 [shape = 'u32[144,128]{1,0:T(1,128)}', space=vmem, size = 0x12000, scoped, tag = 'internal scratch']
  #allocation2 [shape = 'f32[8,401]{1,0:T(8,128)}', space=vmem, size = 0x4000, scoped, tag = 'scratch operand']
  #allocation3 [shape = 'f32[40,512]{1,0:T(8,128)}', space=vmem, size = 0x14000, scoped, tag = 'scratch operand']
  %s0 = inlined_call_operand.vmem [shape: f32[8,256], index: 0, kind: input, shape index: {}]
  %s1 = inlined_call_operand.vmem [shape: f32[4,40], index: 1, kind: input, shape index: {}]
  %s2 = inlined_call_operand.vmem [shape: f32[4,1], index: 2, kind: input, shape index: {}]
  %s3 = inlined_call_operand.vmem [shape: f32[4,1], index: 3, kind: input, shape index: {}]
  %s4 = inlined_call_operand.vmem [shape: f32[4,40], index: 4, kind: input, shape index: {}]
  %s5 = inlined_call_operand.vmem [shape: f32[4,1], index: 5, kind: input, shape index: {}]
  %s6 = inlined_call_operand.vmem [shape: f32[4,1], index: 6, kind: input, shape index: {}]
  %s7 = inlined_call_operand.hbm [shape: f32[8,256], index: 7, kind: output, shape index: {}]
  %s8 = sld [smem:[#allocation0]]
  $region38: #{tpu_custom_call.1} parent=0
    _
  %s10 = ssub.s32 1, %s8
  %s11 = scalar_select 0, %s10, %s8
  $region1: #{tpu_custom_call.1} parent=0
    #allocation4 [shape = 'u8[8192]{0}', space=vmem, size = 0x2000, scoped, tag = 'output window, operand 0, single buffered']
    #allocation5 [shape = 's32[1]{0}', space=sflag, size = 0x4, scoped, tag = 'scoped memory for tpu_custom_call.1']
    %12 = vsyncpa [#allocation5], 0
    // Predicated region
    $region2: #{tpu_custom_call.1} parent=1 // pred_check
      _
    $region3: #{tpu_custom_call.1} parent=1 // pred_check_branch
      %14 = sbr.rel (0) target = $region5
    $region4: #{tpu_custom_call.1} parent=1 // pred_region
      _
    $region5: #{tpu_custom_call.1} parent=1 // pred_fallthru
      _
    // Predicated region
    $region6: #{tpu_custom_call.1} parent=1 // pred_check
      _
    $region7: #{tpu_custom_call.1} parent=1 // pred_check_branch
      %16 = sbr.rel (0) target = $region9
    $region8: #{tpu_custom_call.1} parent=1 // pred_region
      _
    $region9: #{tpu_custom_call.1} parent=1 // pred_fallthru
      _
    // Predicated region
    $region10: #{tpu_custom_call.1} parent=1 // pred_check
      _
    $region11: #{tpu_custom_call.1} parent=1 // pred_check_branch
      %18 = sbr.rel (0) target = $region13
    $region12: #{tpu_custom_call.1} parent=1 // pred_region
      _
    $region13: #{tpu_custom_call.1} parent=1 // pred_fallthru
      _
    // Predicated region
    $region14: #{tpu_custom_call.1} parent=1 // pred_check
      _
    $region15: #{tpu_custom_call.1} parent=1 // pred_check_branch
      %20 = sbr.rel (0) target = $region17
    $region16: #{tpu_custom_call.1} parent=1 // pred_region
      _
    $region17: #{tpu_custom_call.1} parent=1 // pred_fallthru
      _
    // Predicated region
    $region18: #{tpu_custom_call.1} parent=1 // pred_check
      _
    $region19: #{tpu_custom_call.1} parent=1 // pred_check_branch
      %22 = sbr.rel (0) target = $region21
    $region20: #{tpu_custom_call.1} parent=1 // pred_region
      _
    $region21: #{tpu_custom_call.1} parent=1 // pred_fallthru
      _
    // Predicated region
    $region22: #{tpu_custom_call.1} parent=1 // pred_check
      _
    $region23: #{tpu_custom_call.1} parent=1 // pred_check_branch
      %24 = sbr.rel (0) target = $region25
    $region24: #{tpu_custom_call.1} parent=1 // pred_region
      _
    $region25: #{tpu_custom_call.1} parent=1 // pred_fallthru
      _
    // Predicated region
    $region26: #{tpu_custom_call.1} parent=1 // pred_check
      _
    $region27: #{tpu_custom_call.1} parent=1 // pred_check_branch
      %26 = sbr.rel (0) target = $region29
    $region28: #{tpu_custom_call.1} parent=1 // pred_region
      _
    $region29: #{tpu_custom_call.1} parent=1 // pred_fallthru
      _
    %v27 = vlaneseq
    %v28 = vand.u32 %v27, 127
    %v29 = vadd.s32 %v28, 128
    %v30 = vadd.s32 %v28, 256
    %v31 = vadd.s32 %v28, 384
    %vm32 = vcmp.lt.s32.totalorder %v28, 0
    %v33 = vsub.s32 0, %v28
    %v34 = vsel %vm32, %v33, %v28
    %v35 = vshrl.u32 %v34, 4
    %v36 = vand.u32 %v34, 15
    %v37 = vsub.s32 0, %v36
    %v38 = vsel %vm32, %v37, %v36
    %vm39 = vcmp.lt.s32.totalorder %v29, 0
    %v40 = vsub.s32 0, %v29
    %v41 = vsel %vm39, %v40, %v29
    %v42 = vshrl.u32 %v41, 4
    %v43 = vand.u32 %v41, 15
    %v44 = vsub.s32 0, %v43
    %v45 = vsel %vm39, %v44, %v43
    %vm46 = vcmp.lt.s32.totalorder %v30, 0
    %v47 = vsub.s32 0, %v30
    %v48 = vsel %vm46, %v47, %v30
    %v49 = vshrl.u32 %v48, 4
    %v50 = vand.u32 %v48, 15
    %v51 = vsub.s32 0, %v50
    %v52 = vsel %vm46, %v51, %v50
    %vm53 = vcmp.lt.s32.totalorder %v31, 0
    %v54 = vsub.s32 0, %v31
    %v55 = vsel %vm53, %v54, %v31
    %v56 = vshrl.u32 %v55, 4
    %v57 = vand.u32 %v55, 15
    %v58 = vsub.s32 0, %v57
    %v59 = vsel %vm53, %v58, %v57
    %vm60 = vcmp.ne.s32.totalorder %v38, 0
    %vm61 = vcmp.ne.s32.totalorder %v45, 0
    %vm62 = vcmp.ne.s32.totalorder %v52, 0
    %vm63 = vcmp.ne.s32.totalorder %v59, 0
    %vm64 = vcmp.lt.s32.totalorder %v38, 0
    %vm65 = vcmp.lt.s32.totalorder %v45, 0
    %vm66 = vcmp.lt.s32.totalorder %v52, 0
    %vm67 = vcmp.lt.s32.totalorder %v59, 0
    %vm68 = vmand %vm64, %vm60
    %vm69 = vmand %vm65, %vm61
    %vm70 = vmand %vm66, %vm62
    %vm71 = vmand %vm67, %vm63
    %v72 = vadd.s32 %v38, 16
    %v73 = vadd.s32 %v45, 16
    %v74 = vadd.s32 %v52, 16
    %v75 = vadd.s32 %v59, 16
    %v76 = vsel %vm68, %v72, %v38
    %v77 = vsel %vm69, %v73, %v45
    %v78 = vsel %vm70, %v74, %v52
    %v79 = vsel %vm71, %v75, %v59
    %v80 = vadd.s32 %v76, 4294967295
    %v81 = vadd.s32 %v77, 4294967295
    %v82 = vadd.s32 %v78, 4294967295
    %v83 = vadd.s32 %v79, 4294967295
    %vm84 = vcmp.ge.s32.totalorder %v80, 0
    %vm85 = vcmp.ge.s32.totalorder %v81, 0
    %vm86 = vcmp.ge.s32.totalorder %v82, 0
    %vm87 = vcmp.ge.s32.totalorder %v83, 0
    %vm88 = vcmp.lt.s32.totalorder %v80, 16
    %vm89 = vcmp.lt.s32.totalorder %v81, 16
    %vm90 = vcmp.lt.s32.totalorder %v82, 16
    %vm91 = vcmp.lt.s32.totalorder %v83, 16
    %vm92 = vmand %vm84, %vm88
    %vm93 = vmand %vm85, %vm89
    %vm94 = vmand %vm86, %vm90
    %vm95 = vmand %vm87, %vm91
    %v96 = vadd.s32 %v76, 1
    %v97 = vadd.s32 %v77, 1
    %v98 = vadd.s32 %v78, 1
    %v99 = vadd.s32 %v79, 1
    %vm100 = vcmp.ge.s32.totalorder %v96, 0
    %vm101 = vcmp.ge.s32.totalorder %v97, 0
    %vm102 = vcmp.ge.s32.totalorder %v98, 0
    %vm103 = vcmp.ge.s32.totalorder %v99, 0
    %vm104 = vcmp.lt.s32.totalorder %v96, 16
    %vm105 = vcmp.lt.s32.totalorder %v97, 16
    %vm106 = vcmp.lt.s32.totalorder %v98, 16
    %vm107 = vcmp.lt.s32.totalorder %v99, 16
    %vm108 = vmand %vm100, %vm104
    %vm109 = vmand %vm101, %vm105
    %vm110 = vmand %vm102, %vm106
    %vm111 = vmand %vm103, %vm107
    %v112 = vld [vmem:[%s0] sm:$0xf]
    %v113 = vld [vmem:[%s0 + $0x8] sm:$0xf]
    %v114 = vld [vmem:[%s0] sm:$0xf0]
    %v115 = vld [vmem:[%s0 + $0x8] sm:$0xf0]
    %v118 = vrot.slane %v114, 4
    %v119 = vrot.slane %v115, 4
    %122 = vst [vmem:[#allocation2] sm:$0xff] 0.0
    %123 = vst [vmem:[#allocation2 + $0x8] sm:$0xff] 0.0
    %124 = vst [vmem:[#allocation2 + $0x10] sm:$0xff] 0.0
    %vm125 = vcmask 138240
    %126 = vst.msk [vmem:[#allocation2 + $0x18] sm:$0xff] %vm125, 0.0
    %127 = vst [vmem:[#allocation3] sm:$0xff] 0.0
    %128 = vst [vmem:[#allocation3 + $0x8] sm:$0xff] 0.0
    %129 = vst [vmem:[#allocation3 + $0x10] sm:$0xff] 0.0
    %130 = vst [vmem:[#allocation3 + $0x18] sm:$0xff] 0.0
    %131 = vst [vmem:[#allocation3 + $0x20] sm:$0xff] 0.0
    %132 = vst [vmem:[#allocation3 + $0x28] sm:$0xff] 0.0
    %133 = vst [vmem:[#allocation3 + $0x30] sm:$0xff] 0.0
    %134 = vst [vmem:[#allocation3 + $0x38] sm:$0xff] 0.0
    %135 = vst [vmem:[#allocation3 + $0x40] sm:$0xff] 0.0
    %136 = vst [vmem:[#allocation3 + $0x48] sm:$0xff] 0.0
    %137 = vst [vmem:[#allocation3 + $0x50] sm:$0xff] 0.0
    %138 = vst [vmem:[#allocation3 + $0x58] sm:$0xff] 0.0
    %139 = vst [vmem:[#allocation3 + $0x60] sm:$0xff] 0.0
    %140 = vst [vmem:[#allocation3 + $0x68] sm:$0xff] 0.0
    %141 = vst [vmem:[#allocation3 + $0x70] sm:$0xff] 0.0
    %142 = vst [vmem:[#allocation3 + $0x78] sm:$0xff] 0.0
    %143 = vst [vmem:[#allocation3 + $0x80] sm:$0xff] 0.0
    %144 = vst [vmem:[#allocation3 + $0x88] sm:$0xff] 0.0
    %145 = vst [vmem:[#allocation3 + $0x90] sm:$0xff] 0.0
    %146 = vst [vmem:[#allocation3 + $0x98] sm:$0xff] 0.0
    %147 = vst [vmem:[#allocation2 + $0x8] sm:$0xf] %v112
    %148 = vst [vmem:[#allocation2 + $0x10] sm:$0xf] %v113
    %v149 = vrot.slane %v118, 4
    %v150 = vrot.slane %v119, 4
    %153 = vst [vmem:[#allocation2 + $0x8] sm:$0xf0] %v149
    %154 = vst [vmem:[#allocation2 + $0x10] sm:$0xf0] %v150
    %v155 = vld [vmem:[#allocation2] sm:$0xff]
    %v156 = vld [vmem:[#allocation2 + $0x8] sm:$0xff]
    %v157 = vld [vmem:[#allocation2 + $0x10] sm:$0xff]
    %v158 = vld [vmem:[#allocation2 + $0x18] sm:$0xff]
    %162 = vrot.lane.b32.xlu0 %v155, 17
    %v163 = vpop.permute.xlu0 %162
    %164 = vrot.lane.b32.xlu0 %v156, 17
    %v165 = vpop.permute.xlu0 %164
    %166 = vrot.lane.b32.xlu0 %v157, 17
    %v167 = vpop.permute.xlu0 %166
    %v168 = vsel %vm125, %v163, %v165
    %v169 = vsel %vm125, %v165, %v167
    %v172 = vrot.slane %v155, 4
    %v173 = vrot.slane %v156, 4
    %v174 = vrot.slane %v157, 4
    %175 = vrot.lane.b32.xlu0 %v172, 17
    %v176 = vpop.permute.xlu0 %175
    %177 = vrot.lane.b32.xlu0 %v173, 17
    %v178 = vpop.permute.xlu0 %177
    %179 = vrot.lane.b32.xlu0 %v174, 17
    %v180 = vpop.permute.xlu0 %179
    %v181 = vsel %vm125, %v176, %v178
    %v182 = vsel %vm125, %v178, %v180
    %v185 = vsel %vm92, %v168, 0.0
    %v186 = vsel %vm93, %v169, 0.0
    %v187 = vsel %vm94, %v181, 0.0
    %v188 = vsel %vm95, %v182, 0.0
    %189 = vst [vmem:[#allocation3] sm:$0xf] %v185
    %190 = vst [vmem:[#allocation3 + $0x8] sm:$0xf] %v186
    %191 = vst [vmem:[#allocation3 + $0x10] sm:$0xf] %v187
    %192 = vst [vmem:[#allocation3 + $0x18] sm:$0xf] %v188
    %193 = vrot.lane.b32.xlu0 %v155, 16
    %v194 = vpop.permute.xlu0 %193
    %195 = vrot.lane.b32.xlu0 %v156, 16
    %v196 = vpop.permute.xlu0 %195
    %197 = vrot.lane.b32.xlu0 %v157, 16
    %v198 = vpop.permute.xlu0 %197
    %vm199 = vcmask 130048
    %v200 = vsel %vm199, %v194, %v196
    %v201 = vsel %vm199, %v196, %v198
    %202 = vrot.lane.b32.xlu0 %v172, 16
    %v203 = vpop.permute.xlu0 %202
    %204 = vrot.lane.b32.xlu0 %v173, 16
    %v205 = vpop.permute.xlu0 %204
    %206 = vrot.lane.b32.xlu0 %v174, 16
    %v207 = vpop.permute.xlu0 %206
    %v208 = vsel %vm199, %v203, %v205
    %v209 = vsel %vm199, %v205, %v207
    %v210 = vrot.slane %v200, 4
    %v211 = vrot.slane %v201, 4
    %v212 = vrot.slane %v208, 4
    %v213 = vrot.slane %v209, 4
    %218 = vst [vmem:[#allocation3] sm:$0xf0] %v210
    %219 = vst [vmem:[#allocation3 + $0x8] sm:$0xf0] %v211
    %220 = vst [vmem:[#allocation3 + $0x10] sm:$0xf0] %v212
    %221 = vst [vmem:[#allocation3 + $0x18] sm:$0xf0] %v213
    %222 = vrot.lane.b32.xlu0 %v155, 15
    %v223 = vpop.permute.xlu0 %222
    %224 = vrot.lane.b32.xlu0 %v156, 15
    %v225 = vpop.permute.xlu0 %224
    %226 = vrot.lane.b32.xlu0 %v157, 15
    %v227 = vpop.permute.xlu0 %226
    %vm228 = vcmask 121856
    %v229 = vsel %vm228, %v223, %v225
    %v230 = vsel %vm228, %v225, %v227
    %233 = vrot.lane.b32.xlu0 %v172, 15
    %v234 = vpop.permute.xlu0 %233
    %235 = vrot.lane.b32.xlu0 %v173, 15
    %v236 = vpop.permute.xlu0 %235
    %237 = vrot.lane.b32.xlu0 %v174, 15
    %v238 = vpop.permute.xlu0 %237
    %v239 = vsel %vm228, %v234, %v236
    %v240 = vsel %vm228, %v236, %v238
    %v243 = vsel %vm108, %v229, 0.0
    %v244 = vsel %vm109, %v230, 0.0
    %v245 = vsel %vm110, %v239, 0.0
    %v246 = vsel %vm111, %v240, 0.0
    %247 = vst [vmem:[#allocation3 + $0x20] sm:$0xf] %v243
    %248 = vst [vmem:[#allocation3 + $0x28] sm:$0xf] %v244
    %249 = vst [vmem:[#allocation3 + $0x30] sm:$0xf] %v245
    %250 = vst [vmem:[#allocation3 + $0x38] sm:$0xf] %v246
    %251 = vrot.lane.b32.xlu0 %v155, 1
    %v252 = vpop.permute.xlu0 %251
    %253 = vrot.lane.b32.xlu0 %v156, 1
    %v254 = vpop.permute.xlu0 %253
    %255 = vrot.lane.b32.xlu0 %v157, 1
    %v256 = vpop.permute.xlu0 %255
    %vm257 = vcmask 7168
    %v258 = vsel %vm257, %v252, %v254
    %v259 = vsel %vm257, %v254, %v256
    %262 = vrot.lane.b32.xlu0 %v172, 1
    %v263 = vpop.permute.xlu0 %262
    %264 = vrot.lane.b32.xlu0 %v173, 1
    %v265 = vpop.permute.xlu0 %264
    %266 = vrot.lane.b32.xlu0 %v174, 1
    %v267 = vpop.permute.xlu0 %266
    %v268 = vsel %vm257, %v263, %v265
    %v269 = vsel %vm257, %v265, %v267
    %v272 = vsel %vm92, %v258, 0.0
    %v273 = vsel %vm93, %v259, 0.0
    %v274 = vsel %vm94, %v268, 0.0
    %v275 = vsel %vm95, %v269, 0.0
    %v280 = vrot.slane %v272, 4
    %v281 = vrot.slane %v273, 4
    %v282 = vrot.slane %v274, 4
    %v283 = vrot.slane %v275, 4
    %288 = vst [vmem:[#allocation3 + $0x20] sm:$0xf0] %v280
    %289 = vst [vmem:[#allocation3 + $0x28] sm:$0xf0] %v281
    %290 = vst [vmem:[#allocation3 + $0x30] sm:$0xf0] %v282
    %291 = vst [vmem:[#allocation3 + $0x38] sm:$0xf0] %v283
    %294 = vst [vmem:[#allocation3 + $0x40] sm:$0xf] %v156
    %295 = vst [vmem:[#allocation3 + $0x48] sm:$0xf] %v157
    %296 = vst [vmem:[#allocation3 + $0x50] sm:$0xf] %v173
    %297 = vst [vmem:[#allocation3 + $0x58] sm:$0xf] %v174
    %299 = vrot.lane.b32.xlu0 %v156, 127
    %v300 = vpop.permute.xlu0 %299
    %301 = vrot.lane.b32.xlu0 %v157, 127
    %v302 = vpop.permute.xlu0 %301
    %303 = vrot.lane.b32.xlu0 %v158, 127
    %v304 = vpop.permute.xlu0 %303
    %vm305 = vcmask 1039360
    %v306 = vsel %vm305, %v300, %v302
    %v307 = vsel %vm305, %v302, %v304
    %v310 = vrot.slane %v158, 4
    %311 = vrot.lane.b32.xlu0 %v173, 127
    %v312 = vpop.permute.xlu0 %311
    %313 = vrot.lane.b32.xlu0 %v174, 127
    %v314 = vpop.permute.xlu0 %313
    %315 = vrot.lane.b32.xlu0 %v310, 127
    %v316 = vpop.permute.xlu0 %315
    %v317 = vsel %vm305, %v312, %v314
    %v318 = vsel %vm305, %v314, %v316
    %v321 = vsel %vm108, %v306, 0.0
    %v322 = vsel %vm109, %v307, 0.0
    %v323 = vsel %vm110, %v317, 0.0
    %v324 = vsel %vm111, %v318, 0.0
    %v329 = vrot.slane %v321, 4
    %v330 = vrot.slane %v322, 4
    %v331 = vrot.slane %v323, 4
    %v332 = vrot.slane %v324, 4
    %337 = vst [vmem:[#allocation3 + $0x40] sm:$0xf0] %v329
    %338 = vst [vmem:[#allocation3 + $0x48] sm:$0xf0] %v330
    %339 = vst [vmem:[#allocation3 + $0x50] sm:$0xf0] %v331
    %340 = vst [vmem:[#allocation3 + $0x58] sm:$0xf0] %v332
    %341 = vrot.lane.b32.xlu0 %v156, 113
    %v342 = vpop.permute.xlu0 %341
    %343 = vrot.lane.b32.xlu0 %v157, 113
    %v344 = vpop.permute.xlu0 %343
    %345 = vrot.lane.b32.xlu0 %v158, 113
    %v346 = vpop.permute.xlu0 %345
    %vm347 = vcmask 924672
    %v348 = vsel %vm347, %v342, %v344
    %v349 = vsel %vm347, %v344, %v346
    %352 = vrot.lane.b32.xlu0 %v173, 113
    %v353 = vpop.permute.xlu0 %352
    %354 = vrot.lane.b32.xlu0 %v174, 113
    %v355 = vpop.permute.xlu0 %354
    %356 = vrot.lane.b32.xlu0 %v310, 113
    %v357 = vpop.permute.xlu0 %356
    %v358 = vsel %vm347, %v353, %v355
    %v359 = vsel %vm347, %v355, %v357
    %v362 = vsel %vm92, %v348, 0.0
    %v363 = vsel %vm93, %v349, 0.0
    %v364 = vsel %vm94, %v358, 0.0
    %v365 = vsel %vm95, %v359, 0.0
    %366 = vst [vmem:[#allocation3 + $0x60] sm:$0xf] %v362
    %367 = vst [vmem:[#allocation3 + $0x68] sm:$0xf] %v363
    %368 = vst [vmem:[#allocation3 + $0x70] sm:$0xf] %v364
    %369 = vst [vmem:[#allocation3 + $0x78] sm:$0xf] %v365
    %370 = vrot.lane.b32.xlu0 %v156, 112
    %v371 = vpop.permute.xlu0 %370
    %372 = vrot.lane.b32.xlu0 %v157, 112
    %v373 = vpop.permute.xlu0 %372
    %374 = vrot.lane.b32.xlu0 %v158, 112
    %v375 = vpop.permute.xlu0 %374
    %vm376 = vcmask 916480
    %v377 = vsel %vm376, %v371, %v373
    %v378 = vsel %vm376, %v373, %v375
    %379 = vrot.lane.b32.xlu0 %v173, 112
    %v380 = vpop.permute.xlu0 %379
    %381 = vrot.lane.b32.xlu0 %v174, 112
    %v382 = vpop.permute.xlu0 %381
    %383 = vrot.lane.b32.xlu0 %v310, 112
    %v384 = vpop.permute.xlu0 %383
    %v385 = vsel %vm376, %v380, %v382
    %v386 = vsel %vm376, %v382, %v384
    %v387 = vrot.slane %v377, 4
    %v388 = vrot.slane %v378, 4
    %v389 = vrot.slane %v385, 4
    %v390 = vrot.slane %v386, 4
    %395 = vst [vmem:[#allocation3 + $0x60] sm:$0xf0] %v387
    %396 = vst [vmem:[#allocation3 + $0x68] sm:$0xf0] %v388
    %397 = vst [vmem:[#allocation3 + $0x70] sm:$0xf0] %v389
    %398 = vst [vmem:[#allocation3 + $0x78] sm:$0xf0] %v390
    %399 = vrot.lane.b32.xlu0 %v156, 111
    %v400 = vpop.permute.xlu0 %399
    %401 = vrot.lane.b32.xlu0 %v157, 111
    %v402 = vpop.permute.xlu0 %401
    %403 = vrot.lane.b32.xlu0 %v158, 111
    %v404 = vpop.permute.xlu0 %403
    %vm405 = vcmask 908288
    %v406 = vsel %vm405, %v400, %v402
    %v407 = vsel %vm405, %v402, %v404
    %410 = vrot.lane.b32.xlu0 %v173, 111
    %v411 = vpop.permute.xlu0 %410
    %412 = vrot.lane.b32.xlu0 %v174, 111
    %v413 = vpop.permute.xlu0 %412
    %414 = vrot.lane.b32.xlu0 %v310, 111
    %v415 = vpop.permute.xlu0 %414
    %v416 = vsel %vm405, %v411, %v413
    %v417 = vsel %vm405, %v413, %v415
    %v420 = vsel %vm108, %v406, 0.0
    %v421 = vsel %vm109, %v407, 0.0
    %v422 = vsel %vm110, %v416, 0.0
    %v423 = vsel %vm111, %v417, 0.0
    %424 = vst [vmem:[#allocation3 + $0x80] sm:$0xf] %v420
    %425 = vst [vmem:[#allocation3 + $0x88] sm:$0xf] %v421
    %426 = vst [vmem:[#allocation3 + $0x90] sm:$0xf] %v422
    %427 = vst [vmem:[#allocation3 + $0x98] sm:$0xf] %v423
    %v428 = vld [vmem:[%s1] sm:$0xf]
    %v429 = vld [vmem:[#allocation3] sm:$0xff]
    %v430 = vld [vmem:[#allocation3 + $0x8] sm:$0xff]
    %v431 = vld [vmem:[#allocation3 + $0x10] sm:$0xff]
    %v432 = vld [vmem:[#allocation3 + $0x18] sm:$0xff]
    %v433 = vld [vmem:[#allocation3 + $0x20] sm:$0xff]
    %v434 = vld [vmem:[#allocation3 + $0x28] sm:$0xff]
    %v435 = vld [vmem:[#allocation3 + $0x30] sm:$0xff]
    %v436 = vld [vmem:[#allocation3 + $0x38] sm:$0xff]
    %v437 = vld [vmem:[#allocation3 + $0x40] sm:$0xff]
    %v438 = vld [vmem:[#allocation3 + $0x48] sm:$0xff]
    %v439 = vld [vmem:[#allocation3 + $0x50] sm:$0xff]
    %v440 = vld [vmem:[#allocation3 + $0x58] sm:$0xff]
    %v441 = vld [vmem:[#allocation3 + $0x60] sm:$0xff]
    %v442 = vld [vmem:[#allocation3 + $0x68] sm:$0xff]
    %v443 = vld [vmem:[#allocation3 + $0x70] sm:$0xff]
    %v444 = vld [vmem:[#allocation3 + $0x78] sm:$0xff]
    %v445 = vld [vmem:[#allocation3 + $0x80] sm:$0xff]
    %v446 = vld [vmem:[#allocation3 + $0x88] sm:$0xff]
    %v447 = vld [vmem:[#allocation3 + $0x90] sm:$0xff]
    %v448 = vld [vmem:[#allocation3 + $0x98] sm:$0xff]
    %vm449 = vcmask 326656
    %v451 = vsel %vm449, %v428, 0
    %453 = vmatprep.subr.mxu0 %v430
    %454 = vmatpush1.msra.mxu0 %v429
    %455 = vmatprep.subr.mxu0 %v434
    %456 = vmatpush1.msra.mxu0 %v433
    %457 = vmatprep.subr.mxu0 %v438
    %458 = vmatpush1.msra.mxu0 %v437
    %459 = vmatprep.subr.mxu0 %v442
    %460 = vmatpush1.msra.mxu0 %v441
    %461 = vmatprep.subr.mxu0 %v446
    %462 = vmatpush1.msra.mxu0 %v445
    %463 = vmatprep.subr.mxu0 0.0
    %464 = vmatpush1.msra.mxu0 0.0
    %465 = vmatprep.subr.mxu0 0.0
    %466 = vmatpush1.msra.mxu0 0.0
    %467 = vmatprep.subr.mxu0 0.0
    %468 = vmatpush1.msra.mxu0 0.0
    %469 = vmatprep.subr.mxu0 0.0
    %470 = vmatpush1.msra.mxu0 0.0
    %471 = vmatprep.subr.mxu0 0.0
    %472 = vmatpush1.msra.mxu0 0.0
    %473 = vmatprep.subr.mxu0 0.0
    %474 = vmatpush1.msra.mxu0 0.0
    %475 = vmatprep.subr.mxu0 0.0
    %476 = vmatpush1.msra.mxu0 0.0
    %477 = vmatprep.subr.mxu0 0.0
    %478 = vmatpush1.msra.mxu0 0.0
    %479 = vmatprep.subr.mxu0 0.0
    %480 = vmatpush1.msra.mxu0 0.0
    %481 = vmatprep.subr.mxu0 0.0
    %482 = vmatpush1.msra.mxu0 0.0
    %483 = vmatprep.subr.mxu0 0.0
    %484 = vmatpush1.msra.mxu0 0.0
    %485 = vmatprep.subr.mxu0 0.0
    %486 = vmatpush1.msra.mxu0 0.0
    %487 = vmatprep.subr.mxu0 0.0
    %488 = vmatpush1.msra.mxu0 0.0
    %489 = vmatprep.subr.mxu0 0.0
    %490 = vmatpush1.msra.mxu0 0.0
    %491 = vmatprep.subr.mxu0 0.0
    %492 = vmatpush1.msra.mxu0 0.0
    %493 = vmatprep.subr.mxu0 0.0
    %494 = vmatpush1.msra.mxu0 0.0
    %495 = vmatprep.subr.mxu0 0.0
    %496 = vmatpush1.msra.mxu0 0.0
    %497 = vmatprep.subr.mxu0 0.0
    %498 = vmatpush1.msra.mxu0 0.0
    %499 = vmatprep.subr.mxu0 0.0
    %500 = vmatpush1.msra.mxu0 0.0
    %501 = vmatprep.subr.mxu0 0.0
    %502 = vmatpush1.msra.mxu0 0.0
    %503 = vmatprep.subr.mxu0 0.0
    %504 = vmatpush1.msra.mxu0 0.0
    %505 = vmatprep.subr.mxu0 0.0
    %506 = vmatpush1.msra.mxu0 0.0
    %507 = vmatprep.subr.mxu0 0.0
    %508 = vmatpush1.msra.mxu0 0.0
    %509 = vmatprep.subr.mxu0 0.0
    %510 = vmatpush1.msra.mxu0 0.0
    %511 = vmatprep.subr.mxu0 0.0
    %512 = vmatpush1.msra.mxu0 0.0
    %513 = vmatprep.subr.mxu0 0.0
    %514 = vmatpush1.msra.mxu0 0.0
    %515 = vmatprep.subr.mxu0 0.0
    %516 = vmatpush1.msra.mxu0 0.0
    %517 = vmatprep.mubr.f32.mxu0 0.0
    %518 = vmatmul.mubr.f32.gmra.mrb[0].mxu0 %v451
    %v519 = vpop.f32.mrb[0].mxu0
    %v520 = vadd.f32 0.0, %v519
    %v521 = vpop.f32.mrb[0].mxu0
    %v522 = vadd.f32 0.0, %v521
    %523 = vdwg.mxu0
    %524 = vmatprep.subr.mxu0 %v432
    %525 = vmatpush1.msra.mxu0 %v431
    %526 = vmatprep.subr.mxu0 %v436
    %527 = vmatpush1.msra.mxu0 %v435
    %528 = vmatprep.subr.mxu0 %v440
    %529 = vmatpush1.msra.mxu0 %v439
    %530 = vmatprep.subr.mxu0 %v444
    %531 = vmatpush1.msra.mxu0 %v443
    %532 = vmatprep.subr.mxu0 %v448
    %533 = vmatpush1.msra.mxu0 %v447
    %534 = vmatprep.subr.mxu0 0.0
    %535 = vmatpush1.msra.mxu0 0.0
    %536 = vmatprep.subr.mxu0 0.0
    %537 = vmatpush1.msra.mxu0 0.0
    %538 = vmatprep.subr.mxu0 0.0
    %539 = vmatpush1.msra.mxu0 0.0
    %540 = vmatprep.subr.mxu0 0.0
    %541 = vmatpush1.msra.mxu0 0.0
    %542 = vmatprep.subr.mxu0 0.0
    %543 = vmatpush1.msra.mxu0 0.0
    %544 = vmatprep.subr.mxu0 0.0
    %545 = vmatpush1.msra.mxu0 0.0
    %546 = vmatprep.subr.mxu0 0.0
    %547 = vmatpush1.msra.mxu0 0.0
    %548 = vmatprep.subr.mxu0 0.0
    %549 = vmatpush1.msra.mxu0 0.0
    %550 = vmatprep.subr.mxu0 0.0
    %551 = vmatpush1.msra.mxu0 0.0
    %552 = vmatprep.subr.mxu0 0.0
    %553 = vmatpush1.msra.mxu0 0.0
    %554 = vmatprep.subr.mxu0 0.0
    %555 = vmatpush1.msra.mxu0 0.0
    %556 = vmatprep.subr.mxu0 0.0
    %557 = vmatpush1.msra.mxu0 0.0
    %558 = vmatprep.subr.mxu0 0.0
    %559 = vmatpush1.msra.mxu0 0.0
    %560 = vmatprep.subr.mxu0 0.0
    %561 = vmatpush1.msra.mxu0 0.0
    %562 = vmatprep.subr.mxu0 0.0
    %563 = vmatpush1.msra.mxu0 0.0
    %564 = vmatprep.subr.mxu0 0.0
    %565 = vmatpush1.msra.mxu0 0.0
    %566 = vmatprep.subr.mxu0 0.0
    %567 = vmatpush1.msra.mxu0 0.0
    %568 = vmatprep.subr.mxu0 0.0
    %569 = vmatpush1.msra.mxu0 0.0
    %570 = vmatprep.subr.mxu0 0.0
    %571 = vmatpush1.msra.mxu0 0.0
    %572 = vmatprep.subr.mxu0 0.0
    %573 = vmatpush1.msra.mxu0 0.0
    %574 = vmatprep.subr.mxu0 0.0
    %575 = vmatpush1.msra.mxu0 0.0
    %576 = vmatprep.subr.mxu0 0.0
    %577 = vmatpush1.msra.mxu0 0.0
    %578 = vmatprep.subr.mxu0 0.0
    %579 = vmatpush1.msra.mxu0 0.0
    %580 = vmatprep.subr.mxu0 0.0
    %581 = vmatpush1.msra.mxu0 0.0
    %582 = vmatprep.subr.mxu0 0.0
    %583 = vmatpush1.msra.mxu0 0.0
    %584 = vmatprep.subr.mxu0 0.0
    %585 = vmatpush1.msra.mxu0 0.0
    %586 = vmatprep.subr.mxu0 0.0
    %587 = vmatpush1.msra.mxu0 0.0
    %588 = vmatprep.mubr.f32.mxu0 0.0
    %589 = vmatmul.mubr.f32.gmra.mrb[0].mxu0 %v451
    %v590 = vpop.f32.mrb[0].mxu0
    %v591 = vadd.f32 0.0, %v590
    %v592 = vpop.f32.mrb[0].mxu0
    %v593 = vadd.f32 0.0, %v592
    %594 = vdwg.mxu0
    %vm595 = vcmask 1043456
    %v596 = vsel %vm595, %v520, 0.0
    %v597 = vsel %vm595, %v522, 0.0
    %v598 = vadd.f32 %v596, %v597
    %v599 = vsel %vm595, %v591, 0.0
    %v600 = vadd.f32 %v598, %v599
    %v601 = vsel %vm595, %v593, 0.0
    %v602 = vadd.f32 %v600, %v601
    %603 = vadd.xlane.f32.xlu0 %v602
    %v604 = vpop.xlane.xlu0 %603
    %v605 = vrcp.pop 512.0
    %v606 = vmul.f32 %v604, %v605
    %v607 = vsub.f32 %v520, %v606
    %v608 = vsub.f32 %v522, %v606
    %v609 = vsub.f32 %v591, %v606
    %v610 = vsub.f32 %v593, %v606
    %v611 = vmul.f32 %v607, %v607
    %v612 = vmul.f32 %v608, %v608
    %v613 = vmul.f32 %v609, %v609
    %v614 = vmul.f32 %v610, %v610
    %v615 = vsel %vm595, %v611, 0.0
    %v616 = vsel %vm595, %v612, 0.0
    %v617 = vadd.f32 %v615, %v616
    %v618 = vsel %vm595, %v613, 0.0
    %v619 = vadd.f32 %v617, %v618
    %v620 = vsel %vm595, %v614, 0.0
    %v621 = vadd.f32 %v619, %v620
    %622 = vadd.xlane.f32.xlu0 %v621
    %v623 = vpop.xlane.xlu0 %622
    %v624 = vmul.f32 %v623, %v605
    %v625 = vld [vmem:[%s2] sm:$0xf]
    %v626 = vadd.f32 %v624, 1e-05
    %v627 = vrsqrt.pop %v626
    %v628 = vmul.f32 %v625, %v627
    %v629 = vld [vmem:[%s3] sm:$0xf]
    %v630 = vmul.f32 %v606, %v628
    %v631 = vsub.f32 %v629, %v630
    %633 = vset.pattern.permute.xlu0 0
    %634 = vperm.xlu0 %633, %v628
    %v635 = vpop.permute.xlu0 %634
    %v637 = vmul.f32 %v520, %v635
    %v638 = vmul.f32 %v522, %v635
    %v639 = vmul.f32 %v591, %v635
    %v640 = vmul.f32 %v593, %v635
    %642 = vset.pattern.permute.xlu0 0
    %643 = vperm.xlu0 %642, %v631
    %v644 = vpop.permute.xlu0 %643
    %v646 = vadd.f32 %v637, %v644
    %v647 = vadd.f32 %v638, %v644
    %v648 = vadd.f32 %v639, %v644
    %v649 = vadd.f32 %v640, %v644
    %v650 = vmax.f32 %v646, 0.0
    %v651 = vmax.f32 %v647, 0.0
    %v652 = vmax.f32 %v648, 0.0
    %v653 = vmax.f32 %v649, 0.0
    %654 = vst [vmem:[#allocation2 + $0x8] sm:$0xf] %v650
    %655 = vst [vmem:[#allocation2 + $0x10] sm:$0xf] %v651
    %v658 = vrot.slane %v652, 4
    %v659 = vrot.slane %v653, 4
    %662 = vst [vmem:[#allocation2 + $0x8] sm:$0xf0] %v658
    %663 = vst [vmem:[#allocation2 + $0x10] sm:$0xf0] %v659
    %v664 = vld [vmem:[#allocation2] sm:$0xff]
    %v665 = vld [vmem:[#allocation2 + $0x8] sm:$0xff]
    %v666 = vld [vmem:[#allocation2 + $0x10] sm:$0xff]
    %v667 = vld [vmem:[#allocation2 + $0x18] sm:$0xff]
    %671 = vrot.lane.b32.xlu0 %v664, 17
    %v672 = vpop.permute.xlu0 %671
    %673 = vrot.lane.b32.xlu0 %v665, 17
    %v674 = vpop.permute.xlu0 %673
    %675 = vrot.lane.b32.xlu0 %v666, 17
    %v676 = vpop.permute.xlu0 %675
    %v677 = vsel %vm125, %v672, %v674
    %v678 = vsel %vm125, %v674, %v676
    %v681 = vrot.slane %v664, 4
    %v682 = vrot.slane %v665, 4
    %v683 = vrot.slane %v666, 4
    %684 = vrot.lane.b32.xlu0 %v681, 17
    %v685 = vpop.permute.xlu0 %684
    %686 = vrot.lane.b32.xlu0 %v682, 17
    %v687 = vpop.permute.xlu0 %686
    %688 = vrot.lane.b32.xlu0 %v683, 17
    %v689 = vpop.permute.xlu0 %688
    %v690 = vsel %vm125, %v685, %v687
    %v691 = vsel %vm125, %v687, %v689
    %v694 = vsel %vm92, %v677, 0.0
    %v695 = vsel %vm93, %v678, 0.0
    %v696 = vsel %vm94, %v690, 0.0
    %v697 = vsel %vm95, %v691, 0.0
    %698 = vst [vmem:[#allocation3] sm:$0xf] %v694
    %699 = vst [vmem:[#allocation3 + $0x8] sm:$0xf] %v695
    %700 = vst [vmem:[#allocation3 + $0x10] sm:$0xf] %v696
    %701 = vst [vmem:[#allocation3 + $0x18] sm:$0xf] %v697
    %702 = vrot.lane.b32.xlu0 %v664, 16
    %v703 = vpop.permute.xlu0 %702
    %704 = vrot.lane.b32.xlu0 %v665, 16
    %v705 = vpop.permute.xlu0 %704
    %706 = vrot.lane.b32.xlu0 %v666, 16
    %v707 = vpop.permute.xlu0 %706
    %v708 = vsel %vm199, %v703, %v705
    %v709 = vsel %vm199, %v705, %v707
    %710 = vrot.lane.b32.xlu0 %v681, 16
    %v711 = vpop.permute.xlu0 %710
    %712 = vrot.lane.b32.xlu0 %v682, 16
    %v713 = vpop.permute.xlu0 %712
    %714 = vrot.lane.b32.xlu0 %v683, 16
    %v715 = vpop.permute.xlu0 %714
    %v716 = vsel %vm199, %v711, %v713
    %v717 = vsel %vm199, %v713, %v715
    %v718 = vrot.slane %v708, 4
    %v719 = vrot.slane %v709, 4
    %v720 = vrot.slane %v716, 4
    %v721 = vrot.slane %v717, 4
    %726 = vst [vmem:[#allocation3] sm:$0xf0] %v718
    %727 = vst [vmem:[#allocation3 + $0x8] sm:$0xf0] %v719
    %728 = vst [vmem:[#allocation3 + $0x10] sm:$0xf0] %v720
    %729 = vst [vmem:[#allocation3 + $0x18] sm:$0xf0] %v721
    %730 = vrot.lane.b32.xlu0 %v664, 15
    %v731 = vpop.permute.xlu0 %730
    %732 = vrot.lane.b32.xlu0 %v665, 15
    %v733 = vpop.permute.xlu0 %732
    %734 = vrot.lane.b32.xlu0 %v666, 15
    %v735 = vpop.permute.xlu0 %734
    %v736 = vsel %vm228, %v731, %v733
    %v737 = vsel %vm228, %v733, %v735
    %740 = vrot.lane.b32.xlu0 %v681, 15
    %v741 = vpop.permute.xlu0 %740
    %742 = vrot.lane.b32.xlu0 %v682, 15
    %v743 = vpop.permute.xlu0 %742
    %744 = vrot.lane.b32.xlu0 %v683, 15
    %v745 = vpop.permute.xlu0 %744
    %v746 = vsel %vm228, %v741, %v743
    %v747 = vsel %vm228, %v743, %v745
    %v750 = vsel %vm108, %v736, 0.0
    %v751 = vsel %vm109, %v737, 0.0
    %v752 = vsel %vm110, %v746, 0.0
    %v753 = vsel %vm111, %v747, 0.0
    %754 = vst [vmem:[#allocation3 + $0x20] sm:$0xf] %v750
    %755 = vst [vmem:[#allocation3 + $0x28] sm:$0xf] %v751
    %756 = vst [vmem:[#allocation3 + $0x30] sm:$0xf] %v752
    %757 = vst [vmem:[#allocation3 + $0x38] sm:$0xf] %v753
    %758 = vrot.lane.b32.xlu0 %v664, 1
    %v759 = vpop.permute.xlu0 %758
    %760 = vrot.lane.b32.xlu0 %v665, 1
    %v761 = vpop.permute.xlu0 %760
    %762 = vrot.lane.b32.xlu0 %v666, 1
    %v763 = vpop.permute.xlu0 %762
    %v764 = vsel %vm257, %v759, %v761
    %v765 = vsel %vm257, %v761, %v763
    %768 = vrot.lane.b32.xlu0 %v681, 1
    %v769 = vpop.permute.xlu0 %768
    %770 = vrot.lane.b32.xlu0 %v682, 1
    %v771 = vpop.permute.xlu0 %770
    %772 = vrot.lane.b32.xlu0 %v683, 1
    %v773 = vpop.permute.xlu0 %772
    %v774 = vsel %vm257, %v769, %v771
    %v775 = vsel %vm257, %v771, %v773
    %v778 = vsel %vm92, %v764, 0.0
    %v779 = vsel %vm93, %v765, 0.0
    %v780 = vsel %vm94, %v774, 0.0
    %v781 = vsel %vm95, %v775, 0.0
    %v786 = vrot.slane %v778, 4
    %v787 = vrot.slane %v779, 4
    %v788 = vrot.slane %v780, 4
    %v789 = vrot.slane %v781, 4
    %794 = vst [vmem:[#allocation3 + $0x20] sm:$0xf0] %v786
    %795 = vst [vmem:[#allocation3 + $0x28] sm:$0xf0] %v787
    %796 = vst [vmem:[#allocation3 + $0x30] sm:$0xf0] %v788
    %797 = vst [vmem:[#allocation3 + $0x38] sm:$0xf0] %v789
    %800 = vst [vmem:[#allocation3 + $0x40] sm:$0xf] %v665
    %801 = vst [vmem:[#allocation3 + $0x48] sm:$0xf] %v666
    %802 = vst [vmem:[#allocation3 + $0x50] sm:$0xf] %v682
    %803 = vst [vmem:[#allocation3 + $0x58] sm:$0xf] %v683
    %805 = vrot.lane.b32.xlu0 %v665, 127
    %v806 = vpop.permute.xlu0 %805
    %807 = vrot.lane.b32.xlu0 %v666, 127
    %v808 = vpop.permute.xlu0 %807
    %809 = vrot.lane.b32.xlu0 %v667, 127
    %v810 = vpop.permute.xlu0 %809
    %v811 = vsel %vm305, %v806, %v808
    %v812 = vsel %vm305, %v808, %v810
    %v815 = vrot.slane %v667, 4
    %816 = vrot.lane.b32.xlu0 %v682, 127
    %v817 = vpop.permute.xlu0 %816
    %818 = vrot.lane.b32.xlu0 %v683, 127
    %v819 = vpop.permute.xlu0 %818
    %820 = vrot.lane.b32.xlu0 %v815, 127
    %v821 = vpop.permute.xlu0 %820
    %v822 = vsel %vm305, %v817, %v819
    %v823 = vsel %vm305, %v819, %v821
    %v826 = vsel %vm108, %v811, 0.0
    %v827 = vsel %vm109, %v812, 0.0
    %v828 = vsel %vm110, %v822, 0.0
    %v829 = vsel %vm111, %v823, 0.0
    %v834 = vrot.slane %v826, 4
    %v835 = vrot.slane %v827, 4
    %v836 = vrot.slane %v828, 4
    %v837 = vrot.slane %v829, 4
    %842 = vst [vmem:[#allocation3 + $0x40] sm:$0xf0] %v834
    %843 = vst [vmem:[#allocation3 + $0x48] sm:$0xf0] %v835
    %844 = vst [vmem:[#allocation3 + $0x50] sm:$0xf0] %v836
    %845 = vst [vmem:[#allocation3 + $0x58] sm:$0xf0] %v837
    %846 = vrot.lane.b32.xlu0 %v665, 113
    %v847 = vpop.permute.xlu0 %846
    %848 = vrot.lane.b32.xlu0 %v666, 113
    %v849 = vpop.permute.xlu0 %848
    %850 = vrot.lane.b32.xlu0 %v667, 113
    %v851 = vpop.permute.xlu0 %850
    %v852 = vsel %vm347, %v847, %v849
    %v853 = vsel %vm347, %v849, %v851
    %856 = vrot.lane.b32.xlu0 %v682, 113
    %v857 = vpop.permute.xlu0 %856
    %858 = vrot.lane.b32.xlu0 %v683, 113
    %v859 = vpop.permute.xlu0 %858
    %860 = vrot.lane.b32.xlu0 %v815, 113
    %v861 = vpop.permute.xlu0 %860
    %v862 = vsel %vm347, %v857, %v859
    %v863 = vsel %vm347, %v859, %v861
    %v866 = vsel %vm92, %v852, 0.0
    %v867 = vsel %vm93, %v853, 0.0
    %v868 = vsel %vm94, %v862, 0.0
    %v869 = vsel %vm95, %v863, 0.0
    %870 = vst [vmem:[#allocation3 + $0x60] sm:$0xf] %v866
    %871 = vst [vmem:[#allocation3 + $0x68] sm:$0xf] %v867
    %872 = vst [vmem:[#allocation3 + $0x70] sm:$0xf] %v868
    %873 = vst [vmem:[#allocation3 + $0x78] sm:$0xf] %v869
    %874 = vrot.lane.b32.xlu0 %v665, 112
    %v875 = vpop.permute.xlu0 %874
    %876 = vrot.lane.b32.xlu0 %v666, 112
    %v877 = vpop.permute.xlu0 %876
    %878 = vrot.lane.b32.xlu0 %v667, 112
    %v879 = vpop.permute.xlu0 %878
    %v880 = vsel %vm376, %v875, %v877
    %v881 = vsel %vm376, %v877, %v879
    %882 = vrot.lane.b32.xlu0 %v682, 112
    %v883 = vpop.permute.xlu0 %882
    %884 = vrot.lane.b32.xlu0 %v683, 112
    %v885 = vpop.permute.xlu0 %884
    %886 = vrot.lane.b32.xlu0 %v815, 112
    %v887 = vpop.permute.xlu0 %886
    %v888 = vsel %vm376, %v883, %v885
    %v889 = vsel %vm376, %v885, %v887
    %v890 = vrot.slane %v880, 4
    %v891 = vrot.slane %v881, 4
    %v892 = vrot.slane %v888, 4
    %v893 = vrot.slane %v889, 4
    %898 = vst [vmem:[#allocation3 + $0x60] sm:$0xf0] %v890
    %899 = vst [vmem:[#allocation3 + $0x68] sm:$0xf0] %v891
    %900 = vst [vmem:[#allocation3 + $0x70] sm:$0xf0] %v892
    %901 = vst [vmem:[#allocation3 + $0x78] sm:$0xf0] %v893
    %902 = vrot.lane.b32.xlu0 %v665, 111
    %v903 = vpop.permute.xlu0 %902
    %904 = vrot.lane.b32.xlu0 %v666, 111
    %v905 = vpop.permute.xlu0 %904
    %906 = vrot.lane.b32.xlu0 %v667, 111
    %v907 = vpop.permute.xlu0 %906
    %v908 = vsel %vm405, %v903, %v905
    %v909 = vsel %vm405, %v905, %v907
    %912 = vrot.lane.b32.xlu0 %v682, 111
    %v913 = vpop.permute.xlu0 %912
    %914 = vrot.lane.b32.xlu0 %v683, 111
    %v915 = vpop.permute.xlu0 %914
    %916 = vrot.lane.b32.xlu0 %v815, 111
    %v917 = vpop.permute.xlu0 %916
    %v918 = vsel %vm405, %v913, %v915
    %v919 = vsel %vm405, %v915, %v917
    %v922 = vsel %vm108, %v908, 0.0
    %v923 = vsel %vm109, %v909, 0.0
    %v924 = vsel %vm110, %v918, 0.0
    %v925 = vsel %vm111, %v919, 0.0
    %926 = vst [vmem:[#allocation3 + $0x80] sm:$0xf] %v922
    %927 = vst [vmem:[#allocation3 + $0x88] sm:$0xf] %v923
    %928 = vst [vmem:[#allocation3 + $0x90] sm:$0xf] %v924
    %929 = vst [vmem:[#allocation3 + $0x98] sm:$0xf] %v925
    %v930 = vld [vmem:[%s4] sm:$0xf]
    %v931 = vld [vmem:[#allocation3] sm:$0xff]
    %v932 = vld [vmem:[#allocation3 + $0x8] sm:$0xff]
    %v933 = vld [vmem:[#allocation3 + $0x10] sm:$0xff]
    %v934 = vld [vmem:[#allocation3 + $0x18] sm:$0xff]
    %v935 = vld [vmem:[#allocation3 + $0x20] sm:$0xff]
    %v936 = vld [vmem:[#allocation3 + $0x28] sm:$0xff]
    %v937 = vld [vmem:[#allocation3 + $0x30] sm:$0xff]
    %v938 = vld [vmem:[#allocation3 + $0x38] sm:$0xff]
    %v939 = vld [vmem:[#allocation3 + $0x40] sm:$0xff]
    %v940 = vld [vmem:[#allocation3 + $0x48] sm:$0xff]
    %v941 = vld [vmem:[#allocation3 + $0x50] sm:$0xff]
    %v942 = vld [vmem:[#allocation3 + $0x58] sm:$0xff]
    %v943 = vld [vmem:[#allocation3 + $0x60] sm:$0xff]
    %v944 = vld [vmem:[#allocation3 + $0x68] sm:$0xff]
    %v945 = vld [vmem:[#allocation3 + $0x70] sm:$0xff]
    %v946 = vld [vmem:[#allocation3 + $0x78] sm:$0xff]
    %v947 = vld [vmem:[#allocation3 + $0x80] sm:$0xff]
    %v948 = vld [vmem:[#allocation3 + $0x88] sm:$0xff]
    %v949 = vld [vmem:[#allocation3 + $0x90] sm:$0xff]
    %v950 = vld [vmem:[#allocation3 + $0x98] sm:$0xff]
    %v952 = vsel %vm449, %v930, 0
    %954 = vmatprep.subr.mxu0 %v932
    %955 = vmatpush1.msra.mxu0 %v931
    %956 = vmatprep.subr.mxu0 %v936
    %957 = vmatpush1.msra.mxu0 %v935
    %958 = vmatprep.subr.mxu0 %v940
    %959 = vmatpush1.msra.mxu0 %v939
    %960 = vmatprep.subr.mxu0 %v944
    %961 = vmatpush1.msra.mxu0 %v943
    %962 = vmatprep.subr.mxu0 %v948
    %963 = vmatpush1.msra.mxu0 %v947
    %964 = vmatprep.subr.mxu0 0.0
    %965 = vmatpush1.msra.mxu0 0.0
    %966 = vmatprep.subr.mxu0 0.0
    %967 = vmatpush1.msra.mxu0 0.0
    %968 = vmatprep.subr.mxu0 0.0
    %969 = vmatpush1.msra.mxu0 0.0
    %970 = vmatprep.subr.mxu0 0.0
    %971 = vmatpush1.msra.mxu0 0.0
    %972 = vmatprep.subr.mxu0 0.0
    %973 = vmatpush1.msra.mxu0 0.0
    %974 = vmatprep.subr.mxu0 0.0
    %975 = vmatpush1.msra.mxu0 0.0
    %976 = vmatprep.subr.mxu0 0.0
    %977 = vmatpush1.msra.mxu0 0.0
    %978 = vmatprep.subr.mxu0 0.0
    %979 = vmatpush1.msra.mxu0 0.0
    %980 = vmatprep.subr.mxu0 0.0
    %981 = vmatpush1.msra.mxu0 0.0
    %982 = vmatprep.subr.mxu0 0.0
    %983 = vmatpush1.msra.mxu0 0.0
    %984 = vmatprep.subr.mxu0 0.0
    %985 = vmatpush1.msra.mxu0 0.0
    %986 = vmatprep.subr.mxu0 0.0
    %987 = vmatpush1.msra.mxu0 0.0
    %988 = vmatprep.subr.mxu0 0.0
    %989 = vmatpush1.msra.mxu0 0.0
    %990 = vmatprep.subr.mxu0 0.0
    %991 = vmatpush1.msra.mxu0 0.0
    %992 = vmatprep.subr.mxu0 0.0
    %993 = vmatpush1.msra.mxu0 0.0
    %994 = vmatprep.subr.mxu0 0.0
    %995 = vmatpush1.msra.mxu0 0.0
    %996 = vmatprep.subr.mxu0 0.0
    %997 = vmatpush1.msra.mxu0 0.0
    %998 = vmatprep.subr.mxu0 0.0
    %999 = vmatpush1.msra.mxu0 0.0
    %1000 = vmatprep.subr.mxu0 0.0
    %1001 = vmatpush1.msra.mxu0 0.0
    %1002 = vmatprep.subr.mxu0 0.0
    %1003 = vmatpush1.msra.mxu0 0.0
    %1004 = vmatprep.subr.mxu0 0.0
    %1005 = vmatpush1.msra.mxu0 0.0
    %1006 = vmatprep.subr.mxu0 0.0
    %1007 = vmatpush1.msra.mxu0 0.0
    %1008 = vmatprep.subr.mxu0 0.0
    %1009 = vmatpush1.msra.mxu0 0.0
    %1010 = vmatprep.subr.mxu0 0.0
    %1011 = vmatpush1.msra.mxu0 0.0
    %1012 = vmatprep.subr.mxu0 0.0
    %1013 = vmatpush1.msra.mxu0 0.0
    %1014 = vmatprep.subr.mxu0 0.0
    %1015 = vmatpush1.msra.mxu0 0.0
    %1016 = vmatprep.subr.mxu0 0.0
    %1017 = vmatpush1.msra.mxu0 0.0
    %1018 = vmatprep.mubr.f32.mxu0 0.0
    %1019 = vmatmul.mubr.f32.gmra.mrb[0].mxu0 %v952
    %v1020 = vpop.f32.mrb[0].mxu0
    %v1021 = vadd.f32 0.0, %v1020
    %v1022 = vpop.f32.mrb[0].mxu0
    %v1023 = vadd.f32 0.0, %v1022
    %1024 = vdwg.mxu0
    %1025 = vmatprep.subr.mxu0 %v934
    %1026 = vmatpush1.msra.mxu0 %v933
    %1027 = vmatprep.subr.mxu0 %v938
    %1028 = vmatpush1.msra.mxu0 %v937
    %1029 = vmatprep.subr.mxu0 %v942
    %1030 = vmatpush1.msra.mxu0 %v941
    %1031 = vmatprep.subr.mxu0 %v946
    %1032 = vmatpush1.msra.mxu0 %v945
    %1033 = vmatprep.subr.mxu0 %v950
    %1034 = vmatpush1.msra.mxu0 %v949
    %1035 = vmatprep.subr.mxu0 0.0
    %1036 = vmatpush1.msra.mxu0 0.0
    %1037 = vmatprep.subr.mxu0 0.0
    %1038 = vmatpush1.msra.mxu0 0.0
    %1039 = vmatprep.subr.mxu0 0.0
    %1040 = vmatpush1.msra.mxu0 0.0
    %1041 = vmatprep.subr.mxu0 0.0
    %1042 = vmatpush1.msra.mxu0 0.0
    %1043 = vmatprep.subr.mxu0 0.0
    %1044 = vmatpush1.msra.mxu0 0.0
    %1045 = vmatprep.subr.mxu0 0.0
    %1046 = vmatpush1.msra.mxu0 0.0
    %1047 = vmatprep.subr.mxu0 0.0
    %1048 = vmatpush1.msra.mxu0 0.0
    %1049 = vmatprep.subr.mxu0 0.0
    %1050 = vmatpush1.msra.mxu0 0.0
    %1051 = vmatprep.subr.mxu0 0.0
    %1052 = vmatpush1.msra.mxu0 0.0
    %1053 = vmatprep.subr.mxu0 0.0
    %1054 = vmatpush1.msra.mxu0 0.0
    %1055 = vmatprep.subr.mxu0 0.0
    %1056 = vmatpush1.msra.mxu0 0.0
    %1057 = vmatprep.subr.mxu0 0.0
    %1058 = vmatpush1.msra.mxu0 0.0
    %1059 = vmatprep.subr.mxu0 0.0
    %1060 = vmatpush1.msra.mxu0 0.0
    %1061 = vmatprep.subr.mxu0 0.0
    %1062 = vmatpush1.msra.mxu0 0.0
    %1063 = vmatprep.subr.mxu0 0.0
    %1064 = vmatpush1.msra.mxu0 0.0
    %1065 = vmatprep.subr.mxu0 0.0
    %1066 = vmatpush1.msra.mxu0 0.0
    %1067 = vmatprep.subr.mxu0 0.0
    %1068 = vmatpush1.msra.mxu0 0.0
    %1069 = vmatprep.subr.mxu0 0.0
    %1070 = vmatpush1.msra.mxu0 0.0
    %1071 = vmatprep.subr.mxu0 0.0
    %1072 = vmatpush1.msra.mxu0 0.0
    %1073 = vmatprep.subr.mxu0 0.0
    %1074 = vmatpush1.msra.mxu0 0.0
    %1075 = vmatprep.subr.mxu0 0.0
    %1076 = vmatpush1.msra.mxu0 0.0
    %1077 = vmatprep.subr.mxu0 0.0
    %1078 = vmatpush1.msra.mxu0 0.0
    %1079 = vmatprep.subr.mxu0 0.0
    %1080 = vmatpush1.msra.mxu0 0.0
    %1081 = vmatprep.subr.mxu0 0.0
    %1082 = vmatpush1.msra.mxu0 0.0
    %1083 = vmatprep.subr.mxu0 0.0
    %1084 = vmatpush1.msra.mxu0 0.0
    %1085 = vmatprep.subr.mxu0 0.0
    %1086 = vmatpush1.msra.mxu0 0.0
    %1087 = vmatprep.subr.mxu0 0.0
    %1088 = vmatpush1.msra.mxu0 0.0
    %1089 = vmatprep.mubr.f32.mxu0 0.0
    %1090 = vmatmul.mubr.f32.gmra.mrb[0].mxu0 %v952
    %v1091 = vpop.f32.mrb[0].mxu0
    %v1092 = vadd.f32 0.0, %v1091
    %v1093 = vpop.f32.mrb[0].mxu0
    %v1094 = vadd.f32 0.0, %v1093
    %1095 = vdwg.mxu0
    %v1096 = vsel %vm595, %v1021, 0.0
    %v1097 = vsel %vm595, %v1023, 0.0
    %v1098 = vadd.f32 %v1096, %v1097
    %v1099 = vsel %vm595, %v1092, 0.0
    %v1100 = vadd.f32 %v1098, %v1099
    %v1101 = vsel %vm595, %v1094, 0.0
    %v1102 = vadd.f32 %v1100, %v1101
    %1103 = vadd.xlane.f32.xlu0 %v1102
    %v1104 = vpop.xlane.xlu0 %1103
    %v1105 = vmul.f32 %v1104, %v605
    %v1106 = vsub.f32 %v1021, %v1105
    %v1107 = vsub.f32 %v1023, %v1105
    %v1108 = vsub.f32 %v1092, %v1105
    %v1109 = vsub.f32 %v1094, %v1105
    %v1110 = vmul.f32 %v1106, %v1106
    %v1111 = vmul.f32 %v1107, %v1107
    %v1112 = vmul.f32 %v1108, %v1108
    %v1113 = vmul.f32 %v1109, %v1109
    %v1114 = vsel %vm595, %v1110, 0.0
    %v1115 = vsel %vm595, %v1111, 0.0
    %v1116 = vadd.f32 %v1114, %v1115
    %v1117 = vsel %vm595, %v1112, 0.0
    %v1118 = vadd.f32 %v1116, %v1117
    %v1119 = vsel %vm595, %v1113, 0.0
    %v1120 = vadd.f32 %v1118, %v1119
    %1121 = vadd.xlane.f32.xlu0 %v1120
    %v1122 = vpop.xlane.xlu0 %1121
    %v1123 = vmul.f32 %v1122, %v605
    %v1124 = vld [vmem:[%s5] sm:$0xf]
    %v1125 = vadd.f32 %v1123, 1e-05
    %v1126 = vrsqrt.pop %v1125
    %v1127 = vmul.f32 %v1124, %v1126
    %v1128 = vld [vmem:[%s6] sm:$0xf]
    %v1129 = vmul.f32 %v1105, %v1127
    %v1130 = vsub.f32 %v1128, %v1129
    %1132 = vset.pattern.permute.xlu0 0
    %1133 = vperm.xlu0 %1132, %v1127
    %v1134 = vpop.permute.xlu0 %1133
    %v1136 = vmul.f32 %v1021, %v1134
    %v1137 = vmul.f32 %v1023, %v1134
    %v1138 = vmul.f32 %v1092, %v1134
    %v1139 = vmul.f32 %v1094, %v1134
    %1141 = vset.pattern.permute.xlu0 0
    %1142 = vperm.xlu0 %1141, %v1130
    %v1143 = vpop.permute.xlu0 %1142
    %v1145 = vadd.f32 %v1136, %v1143
    %v1146 = vadd.f32 %v1137, %v1143
    %v1147 = vadd.f32 %v1138, %v1143
    %v1148 = vadd.f32 %v1139, %v1143
    %v1149 = vadd.f32 %v1145, %v112
    %v1150 = vadd.f32 %v1146, %v113
    %v1151 = vadd.f32 %v1147, %v118
    %v1152 = vadd.f32 %v1148, %v119
    %v1153 = vmax.f32 %v1149, 0.0
    %v1154 = vmax.f32 %v1150, 0.0
    %v1155 = vmax.f32 %v1151, 0.0
    %v1156 = vmax.f32 %v1152, 0.0
    %1157 = vst [vmem:[#allocation4] sm:$0xf] %v1153
    %1158 = vst [vmem:[#allocation4 + $0x8] sm:$0xf] %v1154
    %v1161 = vrot.slane %v1155, 4
    %v1162 = vrot.slane %v1156, 4
    %1165 = vst [vmem:[#allocation4] sm:$0xf0] %v1161
    %1166 = vst [vmem:[#allocation4 + $0x8] sm:$0xf0] %v1162
    // Predicated region
    $region30: #{tpu_custom_call.1} parent=1 // pred_check
      _
    $region31: #{tpu_custom_call.1} parent=1 // pred_check_branch
      %1168 = sbr.rel (0) target = $region33
    $region32: #{tpu_custom_call.1} parent=1 // pred_region
      %s1170 = ssub.s32 256, 256
      %1171 = vsyncadd [#allocation5], %s1170
      %s1173 = sshll.u32 [#allocation4], 4
      %s1174 = int_to_ptr.vmem [resolvable:$true] %s1173
      %1176 = dma.vmem_to_hbm [thread:$0]  %s1174, 256, %s7, [#allocation5]
    $region33: #{tpu_custom_call.1} parent=1 // pred_fallthru
      _
    // Predicated region
    $region34: #{tpu_custom_call.1} parent=1 // pred_check
      _
    $region35: #{tpu_custom_call.1} parent=1 // pred_check_branch
      %1178 = sbr.rel (0) target = $region37
    $region36: #{tpu_custom_call.1} parent=1 // pred_region
      %1179 = dma.done [#allocation5], 256
    $region37: #{tpu_custom_call.1} parent=1 // pred_fallthru
      _
    %1180 = vsyncpa [#allocation5], 1

</llo_original>
